<compile_context>
chip_gen: v5e
topology: v5e:2x2
jax: 0.10.0
libtpu: 0.0.40
codegen_flags: <defaults>
</compile_context>

<pallas_src>
import numpy as np
import jax
import jax.numpy as jnp
from jax.experimental import pallas as pl
from jax.experimental.pallas import tpu as pltpu

BN_EPS = 1e-5


def bottleneck_kernel(x_ref, w1_ref, b1_ref, w2_ref, b2_ref, w3_ref, b3_ref,
                      o_ref, col_ref):
    """Per grid step: block_n batch samples.
       x_ref:   (NB, H, W, Cin)     f32 input (Cin == Cout, identity shortcut)
       w1_ref:  (Cin, P)            bf16 conv1 (1x1) weights, BN1 scale folded in
       w2_ref:  (3, 3*P, P)         bf16 conv2 (3x3) weights [dh, dw*P+cin, cout],
                                    BN2 scale folded in
       w3_ref:  (P, Cout)           bf16 conv3 (1x1) weights, BN3 scale folded in
       b*_ref:  (1, C)              f32 folded BN bias
       o_ref:   (NB, H, W, Cout)    f32 output
       col_ref: (NB, H+2, W, 3*P)   bf16 scratch: W-im2col of the zero-padded
                                    conv1 activation (col[n,r,w,dw*P+c] =
                                    padded_act[n, r, w+dw, c])."""
    NB, H, W, Cin = x_ref.shape
    P = w1_ref.shape[1]
    Cout = o_ref.shape[3]
    M = NB * H * W

    # Zero only the thin padding edges of the im2col scratch (interior lanes are
    # fully overwritten below).  Done every step: with "parallel" semantics a
    # core's first step is not necessarily program_id == 0.
    zdt = col_ref.dtype
    col_ref[:, 0:1, :, :] = jnp.zeros((NB, 1, W, 3 * P), zdt)          # top pad row
    col_ref[:, H + 1:H + 2, :, :] = jnp.zeros((NB, 1, W, 3 * P), zdt)  # bottom pad row
    col_ref[:, 1:H + 1, 0:1, 0:P] = jnp.zeros((NB, H, 1, P), zdt)      # left pad (dw=0)
    col_ref[:, 1:H + 1, W - 1:W, 2 * P:3 * P] = jnp.zeros((NB, H, 1, P), zdt)  # right pad (dw=2)

    # Residual / conv1 input.  Keep f32 for the residual add; bf16 only at the
    # MXU boundary.  Leading-dim reshape (NB,H,W merge) is layout-preserving.
    x_f32 = x_ref[...].reshape(M, Cin)
    x_bf = x_f32.astype(jnp.bfloat16)

    # ---- conv1 (1x1) -> folded BN1 (scale in weights) -> ReLU : one matmul ----
    t1 = jnp.dot(x_bf, w1_ref[...], preferred_element_type=jnp.float32)
    t1 = jnp.maximum(t1 + b1_ref[0], 0.0)
    t1_hw = t1.astype(jnp.bfloat16).reshape(NB, H, W, P)

    # ---- direct W-im2col staging (no concatenate pass) ----
    # col[n, r, w, dw*P:(dw+1)*P] = padded_act[n, r, w+dw, :]
    col_ref[:, 1:H + 1, 0:W, P:2 * P] = t1_hw                          # dw=1 (aligned)
    col_ref[:, 1:H + 1, 1:W, 0:P] = t1_hw[:, :, 0:W - 1, :]            # dw=0
    col_ref[:, 1:H + 1, 0:W - 1, 2 * P:3 * P] = t1_hw[:, :, 1:W, :]    # dw=2

    # ---- conv2 (3x3, stride 1, pad 1): 3 MXU matmuls with K = 3*P ----
    acc = jnp.dot(col_ref[:, 0:H].reshape(M, 3 * P), w2_ref[0],
                  preferred_element_type=jnp.float32)                  # dh=0 inits acc
    for dh in (1, 2):
        acc = acc + jnp.dot(col_ref[:, dh:dh + H].reshape(M, 3 * P), w2_ref[dh],
                            preferred_element_type=jnp.float32)
    t2 = jnp.maximum(acc + b2_ref[0], 0.0)

    # ---- conv3 (1x1) -> folded BN3 -> identity shortcut + ReLU ----
    t3 = jnp.dot(t2.astype(jnp.bfloat16), w3_ref[...],
                 preferred_element_type=jnp.float32)
    out = jnp.maximum(t3 + b3_ref[0] + x_f32, 0.0)
    o_ref[...] = out.reshape(NB, H, W, Cout).astype(o_ref.dtype)


def fold_bn(gamma, beta, mean, var, eps=BN_EPS):
    scale = gamma / jnp.sqrt(var + eps)
    bias = beta - mean * scale
    return scale, bias


def _pick_block_n(N, H, W, Cin, P, Cout, budget_bytes=24 * 1024 * 1024):
    """Largest batch block that (a) divides N, (b) leaves >=2 grid steps so the
    pipeline double-buffers, and (c) keeps a rough per-step VMEM estimate under
    budget (conservative for v7x's 64 MiB physical VMEM)."""
    def step_bytes(bn):
        io = 2 * bn * H * W * (Cin + Cout) * 4          # double-buffered in/out blocks (f32)
        col = bn * (H + 2) * W * 3 * P * 2              # bf16 im2col scratch
        tmp = bn * H * W * (Cin + Cout + 8 * P) * 4     # f32 value temps (rough)
        return io + col + tmp

    best = 1
    for bn in range(1, N + 1):
        if N % bn != 0:
            continue
        if N >= 2 and N // bn < 2:
            continue
        if step_bytes(bn) > budget_bytes:
            continue
        best = max(best, bn)
    return best


def bottleneck_forward(x_nchw, params, block_n=None):
    """x_nchw: (N, C, H, W) float32 -> (N, C, H, W) float32."""
    (w1, g1, be1, m1, v1,
     w2, g2, be2, m2, v2,
     w3, g3, be3, m3, v3) = params
    N, Cin, H, W = x_nchw.shape
    P = w1.shape[0]          # planes
    Cout = w3.shape[0]       # planes * expansion
    assert Cin == Cout, "identity shortcut requires inplanes == planes*expansion"
    # TODO(synk): stride>1 and the downsample (1x1 conv + BN) shortcut variant of
    # Bottleneck are not implemented (module defaults: stride=1, downsample=None).

    # NCHW -> NHWC (C on the TPU lane axis).  No spatial padding of the input:
    # conv1 is 1x1, so the residual reads the unpadded, tile-aligned input.
    x_nhwc = jnp.transpose(x_nchw, (0, 2, 3, 1)).astype(jnp.float32)

    s1, b1 = fold_bn(g1, be1, m1, v1)
    s2, b2 = fold_bn(g2, be2, m2, v2)
    s3, b3 = fold_bn(g3, be3, m3, v3)

    # Weight prep (once, in XLA): BN scales folded into the output-channel axis
    # of the conv weights, then cast to bf16 for the MXU.
    w1_m = (jnp.transpose(w1[:, :, 0, 0], (1, 0)) * s1[None, :]).astype(jnp.bfloat16)     # (Cin, P)
    w2_hwio = jnp.transpose(w2, (2, 3, 1, 0)) * s2[None, None, None, :]                    # (3,3,P,P)
    w2_m = w2_hwio.reshape(3, 3 * P, P).astype(jnp.bfloat16)                               # (3, 3P, P)
    w3_m = (jnp.transpose(w3[:, :, 0, 0], (1, 0)) * s3[None, :]).astype(jnp.bfloat16)      # (P, Cout)

    if block_n is None:
        block_n = _pick_block_n(N, H, W, Cin, P, Cout)
    grid_n = N // block_n

    const2 = lambda n: (0, 0)
    # TODO(synk): for very large H*W per sample, add an H-row-band grid axis with
    # a 1-row halo to bound per-step VMEM on v7x (64 MiB physical).
    # TODO(synk): for large `planes`, single-buffer the constant-index weight
    # specs (pipeline_mode=pl.Buffered(1)) to avoid a redundant 2x weight copy.
    out_nhwc = pl.pallas_call(
        bottleneck_kernel,
        out_shape=jax.ShapeDtypeStruct((N, H, W, Cout), jnp.float32),
        grid_spec=pltpu.PrefetchScalarGridSpec(
            num_scalar_prefetch=0,
            grid=(grid_n,),
            in_specs=[
                pl.BlockSpec((block_n, H, W, Cin), lambda n: (n, 0, 0, 0)),
                pl.BlockSpec((Cin, P), const2),
                pl.BlockSpec((1, P), const2),
                pl.BlockSpec((3, 3 * P, P), lambda n: (0, 0, 0)),
                pl.BlockSpec((1, P), const2),
                pl.BlockSpec((P, Cout), const2),
                pl.BlockSpec((1, Cout), const2),
            ],
            out_specs=pl.BlockSpec((block_n, H, W, Cout), lambda n: (n, 0, 0, 0)),
            scratch_shapes=[pltpu.VMEM((block_n, H + 2, W, 3 * P), jnp.bfloat16)],
        ),
        compiler_params=pltpu.CompilerParams(
            dimension_semantics=("parallel",),           # pipeline + v7x dual-TC
            vmem_limit_bytes=64 * 1024 * 1024),          # <= physical on v5e/v6e/v7x
    )(x_nhwc, w1_m, b1.reshape(1, -1),
      w2_m, b2.reshape(1, -1),
      w3_m, b3.reshape(1, -1))

    return jnp.transpose(out_nhwc, (0, 3, 1, 2))


def reference_forward(x_nchw, params):
    """Pure-JAX reference (lax convs) mirroring the folded-scale bf16 quantization."""
    (w1, g1, be1, m1, v1,
     w2, g2, be2, m2, v2,
     w3, g3, be3, m3, v3) = params
    x = jnp.transpose(x_nchw, (0, 2, 3, 1)).astype(jnp.float32)
    dn = ('NHWC', 'HWIO', 'NHWC')
    s1, b1 = fold_bn(g1, be1, m1, v1)
    s2, b2 = fold_bn(g2, be2, m2, v2)
    s3, b3 = fold_bn(g3, be3, m3, v3)
    w1_h = (jnp.transpose(w1, (2, 3, 1, 0)) * s1).astype(jnp.bfloat16)
    w2_h = (jnp.transpose(w2, (2, 3, 1, 0)) * s2).astype(jnp.bfloat16)
    w3_h = (jnp.transpose(w3, (2, 3, 1, 0)) * s3).astype(jnp.bfloat16)

    out = jax.lax.conv_general_dilated(x.astype(jnp.bfloat16), w1_h, (1, 1), 'SAME',
                                       dimension_numbers=dn,
                                       preferred_element_type=jnp.float32)
    out = jnp.maximum(out + b1, 0.0)
    out = jax.lax.conv_general_dilated(out.astype(jnp.bfloat16), w2_h, (1, 1), 'SAME',
                                       dimension_numbers=dn,
                                       preferred_element_type=jnp.float32)
    out = jnp.maximum(out + b2, 0.0)
    out = jax.lax.conv_general_dilated(out.astype(jnp.bfloat16), w3_h, (1, 1), 'SAME',
                                       dimension_numbers=dn,
                                       preferred_element_type=jnp.float32)
    out = out + b3
    out = jnp.maximum(out + x, 0.0)
    return jnp.transpose(out, (0, 3, 1, 2))


def init_params(key, inplanes, planes):
    expansion = 4
    out_c = planes * expansion
    ks = jax.random.split(key, 6)
    w1 = jax.random.normal(ks[0], (planes, inplanes, 1, 1), jnp.float32) / np.sqrt(inplanes)
    w2 = jax.random.normal(ks[1], (planes, planes, 3, 3), jnp.float32) / np.sqrt(planes * 9)
    w3 = jax.random.normal(ks[2], (out_c, planes, 1, 1), jnp.float32) / np.sqrt(planes)

    def bn_params(k, c):
        k1, k2, k3, k4 = jax.random.split(k, 4)
        g = 1.0 + 0.1 * jax.random.normal(k1, (c,), jnp.float32)
        b = 0.1 * jax.random.normal(k2, (c,), jnp.float32)
        m = 0.1 * jax.random.normal(k3, (c,), jnp.float32)
        v = jnp.abs(1.0 + 0.1 * jax.random.normal(k4, (c,), jnp.float32))
        return g, b, m, v

    g1, be1, m1, v1 = bn_params(ks[3], planes)
    g2, be2, m2, v2 = bn_params(ks[4], planes)
    g3, be3, m3, v3 = bn_params(ks[5], out_c)
    return (w1, g1, be1, m1, v1, w2, g2, be2, m2, v2, w3, g3, be3, m3, v3)


if __name__ == "__main__":
    # TODO(synk): PyTorch BN in train mode uses batch statistics; here BN is
    # inference mode (running stats folded into per-channel scale/bias).
    key = jax.random.PRNGKey(0)
    k_x, k_p = jax.random.split(key)

    N, planes, H, W = 2, 32, 16, 16
    inplanes = planes * 4           # 128: identity shortcut + lane-dense C
    x = jax.random.normal(k_x, (N, inplanes, H, W), jnp.float32)
    params = init_params(k_p, inplanes, planes)

    out = jax.block_until_ready(bottleneck_forward(x, params))
    ref = jax.block_until_ready(reference_forward(x, params))
    np.testing.assert_allclose(np.asarray(out), np.asarray(ref),
                               rtol=1e-2, atol=1e-2)
    print("KERNEL_OK")
</pallas_src>

<mosaic_0001>
module attributes {stable_mosaic.version = 11 : i64} {
  func.func @bottleneck_kernel(%arg0: i32, %arg1: memref<1x16x16x128xf32, #tpu.memory_space<vmem>>, %arg2: memref<128x32xbf16, #tpu.memory_space<vmem>>, %arg3: memref<1x32xf32, #tpu.memory_space<vmem>>, %arg4: memref<3x96x32xbf16, #tpu.memory_space<vmem>>, %arg5: memref<1x32xf32, #tpu.memory_space<vmem>>, %arg6: memref<32x128xbf16, #tpu.memory_space<vmem>>, %arg7: memref<1x128xf32, #tpu.memory_space<vmem>>, %arg8: memref<1x16x16x128xf32, #tpu.memory_space<vmem>>, %arg9: memref<1x18x16x96xbf16, #tpu.memory_space<vmem>>) attributes {dimension_semantics = [#tpu.dimension_semantics<parallel>], iteration_bounds = array<i64: 2>, scalar_prefetch = 0 : i64, scratch_operands = 1 : i64, tpu.core_type = #tpu.core_type<tc>, window_params = [{transform_indices = @transform_0, window_bounds = array<i64: 1, 16, 16, 128>}, {pipeline_mode = #tpu.pipeline_mode<synchronous>, transform_indices = @transform_1, window_bounds = array<i64: 128, 32>}, {pipeline_mode = #tpu.pipeline_mode<synchronous>, transform_indices = @transform_2, window_bounds = array<i64: 1, 32>}, {pipeline_mode = #tpu.pipeline_mode<synchronous>, transform_indices = @transform_3, window_bounds = array<i64: 3, 96, 32>}, {pipeline_mode = #tpu.pipeline_mode<synchronous>, transform_indices = @transform_4, window_bounds = array<i64: 1, 32>}, {pipeline_mode = #tpu.pipeline_mode<synchronous>, transform_indices = @transform_5, window_bounds = array<i64: 32, 128>}, {pipeline_mode = #tpu.pipeline_mode<synchronous>, transform_indices = @transform_6, window_bounds = array<i64: 1, 128>}, {transform_indices = @transform_7, window_bounds = array<i64: 1, 16, 16, 128>}]} {
    %cst = arith.constant 0.000000e+00 : bf16
    %0 = vector.broadcast %cst : bf16 to vector<1x1x16x96xbf16>
    %c0 = arith.constant 0 : index
    %c0_0 = arith.constant 0 : index
    %c0_1 = arith.constant 0 : index
    %c0_2 = arith.constant 0 : index
    %1 = vector.load %arg9[%c0, %c0_0, %c0_1, %c0_2] : memref<1x18x16x96xbf16, #tpu.memory_space<vmem>>, vector<1x1x16x96xbf16>
    tpu.vector_store %arg9[%c0, %c0_0, %c0_1, %c0_2], %0 {strides = array<i32>} : memref<1x18x16x96xbf16, #tpu.memory_space<vmem>>, vector<1x1x16x96xbf16>,
    %cst_3 = arith.constant 0.000000e+00 : bf16
    %2 = vector.broadcast %cst_3 : bf16 to vector<1x1x16x96xbf16>
    %c0_4 = arith.constant 0 : index
    %c17 = arith.constant 17 : index
    %c0_5 = arith.constant 0 : index
    %c0_6 = arith.constant 0 : index
    %3 = vector.load %arg9[%c0_4, %c17, %c0_5, %c0_6] : memref<1x18x16x96xbf16, #tpu.memory_space<vmem>>, vector<1x1x16x96xbf16>
    tpu.vector_store %arg9[%c0_4, %c17, %c0_5, %c0_6], %2 {strides = array<i32>} : memref<1x18x16x96xbf16, #tpu.memory_space<vmem>>, vector<1x1x16x96xbf16>,
    %cst_7 = arith.constant 0.000000e+00 : bf16
    %4 = vector.broadcast %cst_7 : bf16 to vector<1x16x1x32xbf16>
    %c0_8 = arith.constant 0 : index
    %c1 = arith.constant 1 : index
    %c0_9 = arith.constant 0 : index
    %c0_10 = arith.constant 0 : index
    %5 = vector.load %arg9[%c0_8, %c1, %c0_9, %c0_10] : memref<1x18x16x96xbf16, #tpu.memory_space<vmem>>, vector<1x16x1x32xbf16>
    tpu.vector_store %arg9[%c0_8, %c1, %c0_9, %c0_10], %4 {strides = array<i32>} : memref<1x18x16x96xbf16, #tpu.memory_space<vmem>>, vector<1x16x1x32xbf16>,
    %cst_11 = arith.constant 0.000000e+00 : bf16
    %6 = vector.broadcast %cst_11 : bf16 to vector<1x16x1x32xbf16>
    %c0_12 = arith.constant 0 : index
    %c1_13 = arith.constant 1 : index
    %c15 = arith.constant 15 : index
    %c64 = arith.constant 64 : index
    %7 = vector.load %arg9[%c0_12, %c1_13, %c15, %c64] : memref<1x18x16x96xbf16, #tpu.memory_space<vmem>>, vector<1x16x1x32xbf16>
    tpu.vector_store %arg9[%c0_12, %c1_13, %c15, %c64], %6 {strides = array<i32>} : memref<1x18x16x96xbf16, #tpu.memory_space<vmem>>, vector<1x16x1x32xbf16>,
    %c0_14 = arith.constant 0 : index
    %c0_15 = arith.constant 0 : index
    %c0_16 = arith.constant 0 : index
    %c0_17 = arith.constant 0 : index
    %8 = vector.load %arg1[%c0_14, %c0_15, %c0_16, %c0_17] : memref<1x16x16x128xf32, #tpu.memory_space<vmem>>, vector<1x16x16x128xf32>
    %9 = vector.shape_cast %8 : vector<1x16x16x128xf32> to vector<256x128xf32>
    %10 = arith.truncf %9 : vector<256x128xf32> to vector<256x128xbf16>
    %c0_18 = arith.constant 0 : index
    %c0_19 = arith.constant 0 : index
    %11 = vector.load %arg2[%c0_18, %c0_19] : memref<128x32xbf16, #tpu.memory_space<vmem>>, vector<128x32xbf16>
    %cst_20 = arith.constant dense<0.000000e+00> : vector<256x32xf32>
    %12 = tpu.matmul %10, %11, %cst_20 {dimension_numbers = #tpu.dot_dimension_numbers<[1], [0], [0], [1], [0, 0, 1, 1], [], []>} : vector<256x128xbf16>, vector<128x32xbf16>, vector<256x32xf32> -> vector<256x32xf32>
    %c0_21 = arith.constant 0 : index
    %c0_22 = arith.constant 0 : index
    %13 = vector.load %arg3[%c0_21, %c0_22] : memref<1x32xf32, #tpu.memory_space<vmem>>, vector<1x32xf32>
    %14 = vector.shape_cast %13 : vector<1x32xf32> to vector<32xf32>
    %15 = vector.shape_cast %14 : vector<32xf32> to vector<1x32xf32>
    %16 = vector.broadcast %15 : vector<1x32xf32> to vector<256x32xf32>
    %17 = arith.addf %12, %16 : vector<256x32xf32>
    %cst_23 = arith.constant 0.000000e+00 : f32
    %18 = vector.broadcast %cst_23 : f32 to vector<256x32xf32>
    %19 = arith.maximumf %17, %18 : vector<256x32xf32>
    %20 = arith.truncf %19 : vector<256x32xf32> to vector<256x32xbf16>
    %21 = vector.shape_cast %20 : vector<256x32xbf16> to vector<1x16x16x32xbf16>
    %c0_24 = arith.constant 0 : index
    %c1_25 = arith.constant 1 : index
    %c0_26 = arith.constant 0 : index
    %c32 = arith.constant 32 : index
    %22 = vector.load %arg9[%c0_24, %c1_25, %c0_26, %c32] : memref<1x18x16x96xbf16, #tpu.memory_space<vmem>>, vector<1x16x16x32xbf16>
    tpu.vector_store %arg9[%c0_24, %c1_25, %c0_26, %c32], %21 {strides = array<i32>} : memref<1x18x16x96xbf16, #tpu.memory_space<vmem>>, vector<1x16x16x32xbf16>,
    %23 = vector.extract_strided_slice %21 {offsets = [0, 0, 0, 0], sizes = [1, 16, 15, 32], strides = [1, 1, 1, 1]} : vector<1x16x16x32xbf16> to vector<1x16x15x32xbf16>
    %c0_27 = arith.constant 0 : index
    %c1_28 = arith.constant 1 : index
    %c1_29 = arith.constant 1 : index
    %c0_30 = arith.constant 0 : index
    %24 = vector.load %arg9[%c0_27, %c1_28, %c1_29, %c0_30] : memref<1x18x16x96xbf16, #tpu.memory_space<vmem>>, vector<1x16x15x32xbf16>
    tpu.vector_store %arg9[%c0_27, %c1_28, %c1_29, %c0_30], %23 {strides = array<i32>} : memref<1x18x16x96xbf16, #tpu.memory_space<vmem>>, vector<1x16x15x32xbf16>,
    %25 = vector.extract_strided_slice %21 {offsets = [0, 0, 1, 0], sizes = [1, 16, 15, 32], strides = [1, 1, 1, 1]} : vector<1x16x16x32xbf16> to vector<1x16x15x32xbf16>
    %c0_31 = arith.constant 0 : index
    %c1_32 = arith.constant 1 : index
    %c0_33 = arith.constant 0 : index
    %c64_34 = arith.constant 64 : index
    %26 = vector.load %arg9[%c0_31, %c1_32, %c0_33, %c64_34] : memref<1x18x16x96xbf16, #tpu.memory_space<vmem>>, vector<1x16x15x32xbf16>
    tpu.vector_store %arg9[%c0_31, %c1_32, %c0_33, %c64_34], %25 {strides = array<i32>} : memref<1x18x16x96xbf16, #tpu.memory_space<vmem>>, vector<1x16x15x32xbf16>,
    %c0_35 = arith.constant 0 : index
    %c0_36 = arith.constant 0 : index
    %c0_37 = arith.constant 0 : index
    %c0_38 = arith.constant 0 : index
    %27 = vector.load %arg9[%c0_35, %c0_36, %c0_37, %c0_38] : memref<1x18x16x96xbf16, #tpu.memory_space<vmem>>, vector<1x16x16x96xbf16>
    %28 = vector.shape_cast %27 : vector<1x16x16x96xbf16> to vector<256x96xbf16>
    %c0_39 = arith.constant 0 : index
    %c0_40 = arith.constant 0 : index
    %c0_41 = arith.constant 0 : index
    %29 = vector.load %arg4[%c0_39, %c0_40, %c0_41] : memref<3x96x32xbf16, #tpu.memory_space<vmem>>, vector<1x96x32xbf16>
    %30 = vector.shape_cast %29 : vector<1x96x32xbf16> to vector<96x32xbf16>
    %cst_42 = arith.constant dense<0.000000e+00> : vector<256x32xf32>
    %31 = tpu.matmul %28, %30, %cst_42 {dimension_numbers = #tpu.dot_dimension_numbers<[1], [0], [0], [1], [0, 0, 1, 1], [], []>} : vector<256x96xbf16>, vector<96x32xbf16>, vector<256x32xf32> -> vector<256x32xf32>
    %c0_43 = arith.constant 0 : index
    %c1_44 = arith.constant 1 : index
    %c0_45 = arith.constant 0 : index
    %c0_46 = arith.constant 0 : index
    %32 = vector.load %arg9[%c0_43, %c1_44, %c0_45, %c0_46] : memref<1x18x16x96xbf16, #tpu.memory_space<vmem>>, vector<1x16x16x96xbf16>
    %33 = vector.shape_cast %32 : vector<1x16x16x96xbf16> to vector<256x96xbf16>
    %c1_47 = arith.constant 1 : index
    %c0_48 = arith.constant 0 : index
    %c0_49 = arith.constant 0 : index
    %34 = vector.load %arg4[%c1_47, %c0_48, %c0_49] : memref<3x96x32xbf16, #tpu.memory_space<vmem>>, vector<1x96x32xbf16>
    %35 = vector.shape_cast %34 : vector<1x96x32xbf16> to vector<96x32xbf16>
    %cst_50 = arith.constant dense<0.000000e+00> : vector<256x32xf32>
    %36 = tpu.matmul %33, %35, %cst_50 {dimension_numbers = #tpu.dot_dimension_numbers<[1], [0], [0], [1], [0, 0, 1, 1], [], []>} : vector<256x96xbf16>, vector<96x32xbf16>, vector<256x32xf32> -> vector<256x32xf32>
    %37 = arith.addf %31, %36 : vector<256x32xf32>
    %c0_51 = arith.constant 0 : index
    %c2 = arith.constant 2 : index
    %c0_52 = arith.constant 0 : index
    %c0_53 = arith.constant 0 : index
    %38 = vector.load %arg9[%c0_51, %c2, %c0_52, %c0_53] : memref<1x18x16x96xbf16, #tpu.memory_space<vmem>>, vector<1x16x16x96xbf16>
    %39 = vector.shape_cast %38 : vector<1x16x16x96xbf16> to vector<256x96xbf16>
    %c2_54 = arith.constant 2 : index
    %c0_55 = arith.constant 0 : index
    %c0_56 = arith.constant 0 : index
    %40 = vector.load %arg4[%c2_54, %c0_55, %c0_56] : memref<3x96x32xbf16, #tpu.memory_space<vmem>>, vector<1x96x32xbf16>
    %41 = vector.shape_cast %40 : vector<1x96x32xbf16> to vector<96x32xbf16>
    %cst_57 = arith.constant dense<0.000000e+00> : vector<256x32xf32>
    %42 = tpu.matmul %39, %41, %cst_57 {dimension_numbers = #tpu.dot_dimension_numbers<[1], [0], [0], [1], [0, 0, 1, 1], [], []>} : vector<256x96xbf16>, vector<96x32xbf16>, vector<256x32xf32> -> vector<256x32xf32>
    %43 = arith.addf %37, %42 : vector<256x32xf32>
    %c0_58 = arith.constant 0 : index
    %c0_59 = arith.constant 0 : index
    %44 = vector.load %arg5[%c0_58, %c0_59] : memref<1x32xf32, #tpu.memory_space<vmem>>, vector<1x32xf32>
    %45 = vector.shape_cast %44 : vector<1x32xf32> to vector<32xf32>
    %46 = vector.shape_cast %45 : vector<32xf32> to vector<1x32xf32>
    %47 = vector.broadcast %46 : vector<1x32xf32> to vector<256x32xf32>
    %48 = arith.addf %43, %47 : vector<256x32xf32>
    %cst_60 = arith.constant 0.000000e+00 : f32
    %49 = vector.broadcast %cst_60 : f32 to vector<256x32xf32>
    %50 = arith.maximumf %48, %49 : vector<256x32xf32>
    %51 = arith.truncf %50 : vector<256x32xf32> to vector<256x32xbf16>
    %c0_61 = arith.constant 0 : index
    %c0_62 = arith.constant 0 : index
    %52 = vector.load %arg6[%c0_61, %c0_62] : memref<32x128xbf16, #tpu.memory_space<vmem>>, vector<32x128xbf16>
    %cst_63 = arith.constant dense<0.000000e+00> : vector<256x128xf32>
    %53 = tpu.matmul %51, %52, %cst_63 {dimension_numbers = #tpu.dot_dimension_numbers<[1], [0], [0], [1], [0, 0, 1, 1], [], []>} : vector<256x32xbf16>, vector<32x128xbf16>, vector<256x128xf32> -> vector<256x128xf32>
    %c0_64 = arith.constant 0 : index
    %c0_65 = arith.constant 0 : index
    %54 = vector.load %arg7[%c0_64, %c0_65] : memref<1x128xf32, #tpu.memory_space<vmem>>, vector<1x128xf32>
    %55 = vector.shape_cast %54 : vector<1x128xf32> to vector<128xf32>
    %56 = vector.shape_cast %55 : vector<128xf32> to vector<1x128xf32>
    %57 = vector.broadcast %56 : vector<1x128xf32> to vector<256x128xf32>
    %58 = arith.addf %53, %57 : vector<256x128xf32>
    %59 = arith.addf %58, %9 : vector<256x128xf32>
    %cst_66 = arith.constant 0.000000e+00 : f32
    %60 = vector.broadcast %cst_66 : f32 to vector<256x128xf32>
    %61 = arith.maximumf %59, %60 : vector<256x128xf32>
    %62 = vector.shape_cast %61 : vector<256x128xf32> to vector<1x16x16x128xf32>
    %c0_67 = arith.constant 0 : index
    %c0_68 = arith.constant 0 : index
    %c0_69 = arith.constant 0 : index
    %c0_70 = arith.constant 0 : index
    %63 = vector.load %arg8[%c0_67, %c0_68, %c0_69, %c0_70] : memref<1x16x16x128xf32, #tpu.memory_space<vmem>>, vector<1x16x16x128xf32>
    tpu.vector_store %arg8[%c0_67, %c0_68, %c0_69, %c0_70], %62 {strides = array<i32>} : memref<1x16x16x128xf32, #tpu.memory_space<vmem>>, vector<1x16x16x128xf32>,
    return
  }
  func.func @transform_0(%arg0: i32) -> (i32, i32, i32, i32) {
    %c0_i32 = arith.constant 0 : i32
    %c0_i32_0 = arith.constant 0 : i32
    %c0_i32_1 = arith.constant 0 : i32
    %c0_i32_2 = arith.constant 0 : i32
    return %arg0, %c0_i32, %c0_i32_0, %c0_i32_1 : i32, i32, i32, i32
  }
  func.func @transform_1(%arg0: i32) -> (i32, i32) {
    %c0_i32 = arith.constant 0 : i32
    %c0_i32_0 = arith.constant 0 : i32
    %c0_i32_1 = arith.constant 0 : i32
    return %c0_i32, %c0_i32_0 : i32, i32
  }
  func.func @transform_2(%arg0: i32) -> (i32, i32) {
    %c0_i32 = arith.constant 0 : i32
    %c0_i32_0 = arith.constant 0 : i32
    %c0_i32_1 = arith.constant 0 : i32
    return %c0_i32, %c0_i32_0 : i32, i32
  }
  func.func @transform_3(%arg0: i32) -> (i32, i32, i32) {
    %c0_i32 = arith.constant 0 : i32
    %c0_i32_0 = arith.constant 0 : i32
    %c0_i32_1 = arith.constant 0 : i32
    %c0_i32_2 = arith.constant 0 : i32
    return %c0_i32, %c0_i32_0, %c0_i32_1 : i32, i32, i32
  }
  func.func @transform_4(%arg0: i32) -> (i32, i32) {
    %c0_i32 = arith.constant 0 : i32
    %c0_i32_0 = arith.constant 0 : i32
    %c0_i32_1 = arith.constant 0 : i32
    return %c0_i32, %c0_i32_0 : i32, i32
  }
  func.func @transform_5(%arg0: i32) -> (i32, i32) {
    %c0_i32 = arith.constant 0 : i32
    %c0_i32_0 = arith.constant 0 : i32
    %c0_i32_1 = arith.constant 0 : i32
    return %c0_i32, %c0_i32_0 : i32, i32
  }
  func.func @transform_6(%arg0: i32) -> (i32, i32) {
    %c0_i32 = arith.constant 0 : i32
    %c0_i32_0 = arith.constant 0 : i32
    %c0_i32_1 = arith.constant 0 : i32
    return %c0_i32, %c0_i32_0 : i32, i32
  }
  func.func @transform_7(%arg0: i32) -> (i32, i32, i32, i32) {
    %c0_i32 = arith.constant 0 : i32
    %c0_i32_0 = arith.constant 0 : i32
    %c0_i32_1 = arith.constant 0 : i32
    %c0_i32_2 = arith.constant 0 : i32
    return %arg0, %c0_i32, %c0_i32_0, %c0_i32_1 : i32, i32, i32, i32
  }
}

</mosaic_0001>

<llo_original>
// kernel: tpu_custom_call.1
$region0: #{tpu_custom_call.1}
  #allocation0 [shape = 'u32[]', space=smem, size = 0x4, offset = 0x4, fixed_abs, tag = 'smem constant byte address 0x4 - core index']
  #allocation1 [shape = 'u32[72,128]{1,0:T(1,128)}', space=vmem, size = 0x9000, scoped, tag = 'internal scratch']
  #allocation2 [shape = 'bf16[1,18,16,96]{3,2,1,0:T(8,128)(2,1)}', space=vmem, size = 0x12000, scoped, tag = 'scratch operand']
  %s0 = inlined_call_operand.hbm [shape: f32[2,16,16,128], index: 0, kind: input, shape index: {}]
  %s1 = inlined_call_operand.vmem [shape: bf16[128,32], index: 1, kind: input, shape index: {}]
  %s2 = inlined_call_operand.vmem [shape: f32[1,32], index: 2, kind: input, shape index: {}]
  %s3 = inlined_call_operand.vmem [shape: bf16[3,96,32], index: 3, kind: input, shape index: {}]
  %s4 = inlined_call_operand.vmem [shape: f32[1,32], index: 4, kind: input, shape index: {}]
  %s5 = inlined_call_operand.vmem [shape: bf16[32,128], index: 5, kind: input, shape index: {}]
  %s6 = inlined_call_operand.vmem [shape: f32[1,128], index: 6, kind: input, shape index: {}]
  %s7 = inlined_call_operand.hbm [shape: f32[2,16,16,128], index: 7, kind: output, shape index: {}]
  %s8 = sld [smem:[#allocation0]]
  $region65: #{tpu_custom_call.1} parent=0
    _
  %s10 = ssub.s32 1, %s8
  %s11 = scalar_select 0, %s10, %s8
  $region1: #{tpu_custom_call.1} parent=0
    #allocation3 [shape = 'u8[262144]{0}', space=vmem, size = 0x40000, scoped, tag = 'input window, operand 0']
    #allocation4 [shape = 's32[2]{0}', space=sflag, size = 0x8, scoped, tag = 'scoped memory for tpu_custom_call.1']
    #allocation5 [shape = 's32[2]{0}', space=sflag, size = 0x8, scoped, tag = 'scoped memory for tpu_custom_call.1']
    #allocation6 [shape = 'u8[262144]{0}', space=vmem, size = 0x40000, scoped, tag = 'output window, operand 0']
    %12 = vsyncpa [#allocation4], 0
    %s13 = scalar_lea.sflag [#allocation4], 1
    %14 = vsyncpa %s13, 0
    %15 = vsyncpa [#allocation5], 0
    %s16 = scalar_lea.sflag [#allocation5], 1
    %17 = vsyncpa %s16, 0
    loop: start=0, step=1, limit=4
    $region2: #{tpu_custom_call.1} parent=1 // loop_pre_header
      _
    $region3: #{tpu_custom_call.1} parent=1 // loop_header
      %s19 = sphi 0, %s23
      %p20 = scmp.ge.s32.totalorder %s19, 4
      %s29 = sphi 0, %s31
      %s32 = sphi 0, %s29
      %s33 = sphi 0, %s32
      %s49 = sphi 0, %s33
      %s53 = sphi 0, %s53
      %s55 = sphi 0, %s53
      %s56 = sphi 0, %s55
      %s70 = sphi 0, %s56
      %s74 = sphi 0, %s74
      %s76 = sphi 0, %s74
      %s77 = sphi 0, %s76
      %s91 = sphi 0, %s77
      %s95 = sphi 0, %s95
      %s97 = sphi 0, %s95
      %s98 = sphi 0, %s97
      %s112 = sphi 0, %s98
      %s116 = sphi 0, %s116
      %s118 = sphi 0, %s116
      %s119 = sphi 0, %s118
      %s133 = sphi 0, %s119
      %s137 = sphi 0, %s137
      %s139 = sphi 0, %s137
      %s140 = sphi 0, %s139
      %s154 = sphi 0, %s140
      %s158 = sphi 0, %s158
      %s160 = sphi 0, %s158
      %s161 = sphi 0, %s160
      %s175 = sphi 0, %s161
      %s181 = sphi 0, %s183
      %s184 = sphi 0, %s181
      %s185 = sphi 0, %s184
      %s201 = sphi 0, %s185
    $region4: #{tpu_custom_call.1} parent=1 // loop_header_branch
      %22 = sbr.rel (%p20) target = $region8
    $region5: #{tpu_custom_call.1} parent=1 // loop_body
      %s24 = ssub.s32 %s19, 1
      %s25 = ssub.s32 %s19, 2
      %s26 = sadd.s32 %s19, 1
      %s27 = ssub.s32 %s19, %s26
      %p28 = scmp.eq.s32.totalorder %s27, 0
      %s30 = sadd.s32 %s29, 1
      %s31 = scalar_select %p28, %s29, %s30
      %p34 = pneg %p28
      %p35 = scmp.eq.s32.totalorder %s19, 1
      %p36 = por %p34, %p35
      %p37 = scmp.ne.s32.totalorder %s29, %s32
      %p38 = scmp.eq.s32.totalorder %s19, 0
      %p39 = por %p37, %p38
      %p40 = scmp.ne.s32.totalorder %s29, %s32
      %p41 = scmp.eq.s32.totalorder %s24, 1
      %p42 = por %p40, %p41
      %p43 = scmp.ne.s32.totalorder %s32, %s33
      %p44 = scmp.eq.s32.totalorder %s24, 0
      %p45 = por %p43, %p44
      %p46 = scmp.ne.s32.totalorder %s32, %s33
      %p47 = scmp.eq.s32.totalorder %s25, 1
      %p48 = por %p46, %p47
      %p50 = scmp.ne.s32.totalorder %s33, %s49
      %p51 = scmp.eq.s32.totalorder %s25, 0
      %p52 = por %p50, %p51
      %s54 = sadd.s32 %s53, 1
      %p57 = scmp.eq.s32.totalorder %s19, 1
      %p58 = scmp.ne.s32.totalorder %s53, %s55
      %p59 = scmp.eq.s32.totalorder %s19, 0
      %p60 = por %p58, %p59
      %p61 = scmp.ne.s32.totalorder %s53, %s55
      %p62 = scmp.eq.s32.totalorder %s24, 1
      %p63 = por %p61, %p62
      %p64 = scmp.ne.s32.totalorder %s55, %s56
      %p65 = scmp.eq.s32.totalorder %s24, 0
      %p66 = por %p64, %p65
      %p67 = scmp.ne.s32.totalorder %s55, %s56
      %p68 = scmp.eq.s32.totalorder %s25, 1
      %p69 = por %p67, %p68
      %p71 = scmp.ne.s32.totalorder %s56, %s70
      %p72 = scmp.eq.s32.totalorder %s25, 0
      %p73 = por %p71, %p72
      %s75 = sadd.s32 %s74, 1
      %p78 = scmp.eq.s32.totalorder %s19, 1
      %p79 = scmp.ne.s32.totalorder %s74, %s76
      %p80 = scmp.eq.s32.totalorder %s19, 0
      %p81 = por %p79, %p80
      %p82 = scmp.ne.s32.totalorder %s74, %s76
      %p83 = scmp.eq.s32.totalorder %s24, 1
      %p84 = por %p82, %p83
      %p85 = scmp.ne.s32.totalorder %s76, %s77
      %p86 = scmp.eq.s32.totalorder %s24, 0
      %p87 = por %p85, %p86
      %p88 = scmp.ne.s32.totalorder %s76, %s77
      %p89 = scmp.eq.s32.totalorder %s25, 1
      %p90 = por %p88, %p89
      %p92 = scmp.ne.s32.totalorder %s77, %s91
      %p93 = scmp.eq.s32.totalorder %s25, 0
      %p94 = por %p92, %p93
      %s96 = sadd.s32 %s95, 1
      %p99 = scmp.eq.s32.totalorder %s19, 1
      %p100 = scmp.ne.s32.totalorder %s95, %s97
      %p101 = scmp.eq.s32.totalorder %s19, 0
      %p102 = por %p100, %p101
      %p103 = scmp.ne.s32.totalorder %s95, %s97
      %p104 = scmp.eq.s32.totalorder %s24, 1
      %p105 = por %p103, %p104
      %p106 = scmp.ne.s32.totalorder %s97, %s98
      %p107 = scmp.eq.s32.totalorder %s24, 0
      %p108 = por %p106, %p107
      %p109 = scmp.ne.s32.totalorder %s97, %s98
      %p110 = scmp.eq.s32.totalorder %s25, 1
      %p111 = por %p109, %p110
      %p113 = scmp.ne.s32.totalorder %s98, %s112
      %p114 = scmp.eq.s32.totalorder %s25, 0
      %p115 = por %p113, %p114
      %s117 = sadd.s32 %s116, 1
      %p120 = scmp.eq.s32.totalorder %s19, 1
      %p121 = scmp.ne.s32.totalorder %s116, %s118
      %p122 = scmp.eq.s32.totalorder %s19, 0
      %p123 = por %p121, %p122
      %p124 = scmp.ne.s32.totalorder %s116, %s118
      %p125 = scmp.eq.s32.totalorder %s24, 1
      %p126 = por %p124, %p125
      %p127 = scmp.ne.s32.totalorder %s118, %s119
      %p128 = scmp.eq.s32.totalorder %s24, 0
      %p129 = por %p127, %p128
      %p130 = scmp.ne.s32.totalorder %s118, %s119
      %p131 = scmp.eq.s32.totalorder %s25, 1
      %p132 = por %p130, %p131
      %p134 = scmp.ne.s32.totalorder %s119, %s133
      %p135 = scmp.eq.s32.totalorder %s25, 0
      %p136 = por %p134, %p135
      %s138 = sadd.s32 %s137, 1
      %p141 = scmp.eq.s32.totalorder %s19, 1
      %p142 = scmp.ne.s32.totalorder %s137, %s139
      %p143 = scmp.eq.s32.totalorder %s19, 0
      %p144 = por %p142, %p143
      %p145 = scmp.ne.s32.totalorder %s137, %s139
      %p146 = scmp.eq.s32.totalorder %s24, 1
      %p147 = por %p145, %p146
      %p148 = scmp.ne.s32.totalorder %s139, %s140
      %p149 = scmp.eq.s32.totalorder %s24, 0
      %p150 = por %p148, %p149
      %p151 = scmp.ne.s32.totalorder %s139, %s140
      %p152 = scmp.eq.s32.totalorder %s25, 1
      %p153 = por %p151, %p152
      %p155 = scmp.ne.s32.totalorder %s140, %s154
      %p156 = scmp.eq.s32.totalorder %s25, 0
      %p157 = por %p155, %p156
      %s159 = sadd.s32 %s158, 1
      %p162 = scmp.eq.s32.totalorder %s19, 1
      %p163 = scmp.ne.s32.totalorder %s158, %s160
      %p164 = scmp.eq.s32.totalorder %s19, 0
      %p165 = por %p163, %p164
      %p166 = scmp.ne.s32.totalorder %s158, %s160
      %p167 = scmp.eq.s32.totalorder %s24, 1
      %p168 = por %p166, %p167
      %p169 = scmp.ne.s32.totalorder %s160, %s161
      %p170 = scmp.eq.s32.totalorder %s24, 0
      %p171 = por %p169, %p170
      %p172 = scmp.ne.s32.totalorder %s160, %s161
      %p173 = scmp.eq.s32.totalorder %s25, 1
      %p174 = por %p172, %p173
      %p176 = scmp.ne.s32.totalorder %s161, %s175
      %p177 = scmp.eq.s32.totalorder %s25, 0
      %p178 = por %p176, %p177
      %s179 = ssub.s32 %s19, %s26
      %p180 = scmp.eq.s32.totalorder %s179, 0
      %s182 = sadd.s32 %s181, 1
      %s183 = scalar_select %p180, %s181, %s182
      %p186 = pneg %p180
      %p187 = scmp.eq.s32.totalorder %s19, 1
      %p188 = por %p186, %p187
      %p189 = scmp.ne.s32.totalorder %s181, %s184
      %p190 = scmp.eq.s32.totalorder %s19, 0
      %p191 = por %p189, %p190
      %p192 = scmp.ne.s32.totalorder %s181, %s184
      %p193 = scmp.eq.s32.totalorder %s24, 1
      %p194 = por %p192, %p193
      %p195 = scmp.ne.s32.totalorder %s184, %s185
      %p196 = scmp.eq.s32.totalorder %s24, 0
      %p197 = por %p195, %p196
      %p198 = scmp.ne.s32.totalorder %s184, %s185
      %p199 = scmp.eq.s32.totalorder %s25, 1
      %p200 = por %p198, %p199
      %p202 = scmp.ne.s32.totalorder %s185, %s201
      %p203 = scmp.eq.s32.totalorder %s25, 0
      %p204 = por %p202, %p203
      %p205 = scmp.le.s32.totalorder 1, %s19
      %p206 = scmp.lt.s32.totalorder %s19, 3
      %p207 = pnand %p205, %p206
      %p208 = pneg %p207
      // Predicated region
      $region9: #{tpu_custom_call.1} parent=5 // pred_check
        _
      $region10: #{tpu_custom_call.1} parent=5 // pred_check_branch
        %210 = sbr.rel (%p207) target = $region12
      $region11: #{tpu_custom_call.1} parent=5 // pred_region
        %s211 = ssub.s32 %s19, 1
        // Predicated region
        $region13: #{tpu_custom_call.1} parent=11 // pred_check
          %p212 = pneg %p66
        $region14: #{tpu_custom_call.1} parent=11 // pred_check_branch
          %214 = sbr.rel (%p212) target = $region16
        $region15: #{tpu_custom_call.1} parent=11 // pred_region
          _
        $region16: #{tpu_custom_call.1} parent=11 // pred_fallthru
          _
        // Predicated region
        $region17: #{tpu_custom_call.1} parent=11 // pred_check
          %p215 = pneg %p87
        $region18: #{tpu_custom_call.1} parent=11 // pred_check_branch
          %217 = sbr.rel (%p215) target = $region20
        $region19: #{tpu_custom_call.1} parent=11 // pred_region
          _
        $region20: #{tpu_custom_call.1} parent=11 // pred_fallthru
          _
        // Predicated region
        $region21: #{tpu_custom_call.1} parent=11 // pred_check
          %p218 = pneg %p108
        $region22: #{tpu_custom_call.1} parent=11 // pred_check_branch
          %220 = sbr.rel (%p218) target = $region24
        $region23: #{tpu_custom_call.1} parent=11 // pred_region
          _
        $region24: #{tpu_custom_call.1} parent=11 // pred_fallthru
          _
        // Predicated region
        $region25: #{tpu_custom_call.1} parent=11 // pred_check
          %p221 = pneg %p129
        $region26: #{tpu_custom_call.1} parent=11 // pred_check_branch
          %223 = sbr.rel (%p221) target = $region28
        $region27: #{tpu_custom_call.1} parent=11 // pred_region
          _
        $region28: #{tpu_custom_call.1} parent=11 // pred_fallthru
          _
        // Predicated region
        $region29: #{tpu_custom_call.1} parent=11 // pred_check
          %p224 = pneg %p150
        $region30: #{tpu_custom_call.1} parent=11 // pred_check_branch
          %226 = sbr.rel (%p224) target = $region32
        $region31: #{tpu_custom_call.1} parent=11 // pred_region
          _
        $region32: #{tpu_custom_call.1} parent=11 // pred_fallthru
          _
        // Predicated region
        $region33: #{tpu_custom_call.1} parent=11 // pred_check
          %p227 = pneg %p171
        $region34: #{tpu_custom_call.1} parent=11 // pred_check_branch
          %229 = sbr.rel (%p227) target = $region36
        $region35: #{tpu_custom_call.1} parent=11 // pred_region
          _
        $region36: #{tpu_custom_call.1} parent=11 // pred_fallthru
          _
      $region12: #{tpu_custom_call.1} parent=5 // pred_fallthru
        _
      %p230 = scmp.lt.s32.totalorder %s19, 2
      // Predicated region
      $region37: #{tpu_custom_call.1} parent=5 // pred_check
        %p231 = pneg %p230
      $region38: #{tpu_custom_call.1} parent=5 // pred_check_branch
        %233 = sbr.rel (%p231) target = $region40
      $region39: #{tpu_custom_call.1} parent=5 // pred_region
        // Predicated region
        $region41: #{tpu_custom_call.1} parent=39 // pred_check
          %p234 = pneg %p39
        $region42: #{tpu_custom_call.1} parent=39 // pred_check_branch
          %236 = sbr.rel (%p234) target = $region44
        $region43: #{tpu_custom_call.1} parent=39 // pred_region
          %s237 = sand.u32 %s29, 1
          %s238 = scalar_lea.sflag [#allocation4], %s237
          %s239 = sand.u32 %s29, 1
          %s240 = smul.addr %s239, 256
          %s241 = scalar_lea.vmem [#allocation3], %s240
          %243 = vsyncadd %s238, 0
          %s244 = smul.addr %s19, 32
          %s245 = smul.addr %s244, 8
          %s246 = scalar_lea.hbm %s0, %s245
          %s247 = sshll.u32 %s246, 4
          %s248 = int_to_ptr.hbm [resolvable:$true] %s247
          %s249 = sshll.u32 %s241, 4
          %s250 = int_to_ptr.vmem [resolvable:$true] %s249
          %255 = dma.hbm_to_vmem [thread:$0]  %s248, 4096, %s250, %s238, 128, 128, 8
        $region44: #{tpu_custom_call.1} parent=39 // pred_fallthru
          _
      $region40: #{tpu_custom_call.1} parent=5 // pred_fallthru
        _
      %p256 = scmp.le.s32.totalorder 1, %s19
      %p257 = scmp.lt.s32.totalorder %s19, 3
      %p258 = pnand %p256, %p257
      %p259 = pneg %p258
      // Predicated region
      $region45: #{tpu_custom_call.1} parent=5 // pred_check
        _
      $region46: #{tpu_custom_call.1} parent=5 // pred_check_branch
        %261 = sbr.rel (%p258) target = $region48
      $region47: #{tpu_custom_call.1} parent=5 // pred_region
        %s262 = ssub.s32 %s19, 1
        %s263 = sand.u32 %s32, 1
        %s264 = scalar_lea.sflag [#allocation4], %s263
        %s265 = sand.u32 %s32, 1
        %s266 = smul.addr %s265, 256
        %s267 = scalar_lea.vmem [#allocation3], %s266
        // Predicated region
        $region49: #{tpu_custom_call.1} parent=47 // pred_check
          %p268 = pneg %p45
        $region50: #{tpu_custom_call.1} parent=47 // pred_check_branch
          %270 = sbr.rel (%p268) target = $region52
        $region51: #{tpu_custom_call.1} parent=47 // pred_region
          %272 = dma.done %s264, 4096
        $region52: #{tpu_custom_call.1} parent=47 // pred_fallthru
          _
        %s273 = sand.u32 %s32, 1
        %s274 = scalar_lea.sflag [#allocation4], %s273
        %s275 = sand.u32 %s32, 1
        %s276 = smul.addr %s275, 256
        %s277 = scalar_lea.vmem [#allocation3], %s276
        %p278 = pneg %p45
        %p279 = pneg %p42
        %p280 = pneg %p66
        %p281 = pneg %p63
        %p282 = pneg %p87
        %p283 = pneg %p84
        %p284 = pneg %p108
        %p285 = pneg %p105
        %p286 = pneg %p129
        %p287 = pneg %p126
        %p288 = pneg %p150
        %p289 = pneg %p147
        %p290 = pneg %p171
        %p291 = pneg %p168
        %p292 = pneg %p197
        %p293 = pneg %p194
        %s294 = sand.u32 %s184, 1
        %s295 = scalar_lea.sflag [#allocation5], %s294
        %s296 = sand.u32 %s184, 1
        %s297 = smul.addr %s296, 256
        %s298 = scalar_lea.vmem [#allocation6], %s297
        %vm300 = vcmask 781312
        %301 = vst.msk [vmem:[#allocation2] sm:$0xf] %vm300, 0
        %302 = vst.msk [vmem:[#allocation2 + $0x4] sm:$0xf] %vm300, 0
        %s303 = scalar_lea.vmem [#allocation2], 136
        %304 = vst.msk [vmem:[%s303] sm:$0xf] %vm300, 0
        %305 = vst.msk [vmem:[%s303 + $0x4] sm:$0xf] %vm300, 0
        %s306 = scalar_lea.vmem [#allocation2], 8
        %vm307 = vcmask 253952
        %vm308 = vsmask.f32 256
        %vm309 = vmand %vm307, %vm308
        %v310 = vld [vmem:[%s306] sm:$0x1]
        %v311 = vsel %vm309, 0, %v310
        %312 = vst [vmem:[%s306] sm:$0x1] %v311
        %v313 = vld [vmem:[%s306 + $0x8] sm:$0x1]
        %v314 = vsel %vm309, 0, %v313
        %315 = vst [vmem:[%s306 + $0x8] sm:$0x1] %v314
        %v316 = vld [vmem:[%s306 + $0x10] sm:$0x1]
        %v317 = vsel %vm309, 0, %v316
        %318 = vst [vmem:[%s306 + $0x10] sm:$0x1] %v317
        %v319 = vld [vmem:[%s306 + $0x18] sm:$0x1]
        %v320 = vsel %vm309, 0, %v319
        %321 = vst [vmem:[%s306 + $0x18] sm:$0x1] %v320
        %v322 = vld [vmem:[%s306 + $0x20] sm:$0x1]
        %v323 = vsel %vm309, 0, %v322
        %324 = vst [vmem:[%s306 + $0x20] sm:$0x1] %v323
        %v325 = vld [vmem:[%s306 + $0x28] sm:$0x1]
        %v326 = vsel %vm309, 0, %v325
        %327 = vst [vmem:[%s306 + $0x28] sm:$0x1] %v326
        %v328 = vld [vmem:[%s306 + $0x30] sm:$0x1]
        %v329 = vsel %vm309, 0, %v328
        %330 = vst [vmem:[%s306 + $0x30] sm:$0x1] %v329
        %v331 = vld [vmem:[%s306 + $0x38] sm:$0x1]
        %v332 = vsel %vm309, 0, %v331
        %333 = vst [vmem:[%s306 + $0x38] sm:$0x1] %v332
        %v334 = vld [vmem:[%s306 + $0x40] sm:$0x1]
        %v335 = vsel %vm309, 0, %v334
        %336 = vst [vmem:[%s306 + $0x40] sm:$0x1] %v335
        %v337 = vld [vmem:[%s306 + $0x48] sm:$0x1]
        %v338 = vsel %vm309, 0, %v337
        %339 = vst [vmem:[%s306 + $0x48] sm:$0x1] %v338
        %v340 = vld [vmem:[%s306 + $0x50] sm:$0x1]
        %v341 = vsel %vm309, 0, %v340
        %342 = vst [vmem:[%s306 + $0x50] sm:$0x1] %v341
        %v343 = vld [vmem:[%s306 + $0x58] sm:$0x1]
        %v344 = vsel %vm309, 0, %v343
        %345 = vst [vmem:[%s306 + $0x58] sm:$0x1] %v344
        %v346 = vld [vmem:[%s306 + $0x60] sm:$0x1]
        %v347 = vsel %vm309, 0, %v346
        %348 = vst [vmem:[%s306 + $0x60] sm:$0x1] %v347
        %v349 = vld [vmem:[%s306 + $0x68] sm:$0x1]
        %v350 = vsel %vm309, 0, %v349
        %351 = vst [vmem:[%s306 + $0x68] sm:$0x1] %v350
        %v352 = vld [vmem:[%s306 + $0x70] sm:$0x1]
        %v353 = vsel %vm309, 0, %v352
        %354 = vst [vmem:[%s306 + $0x70] sm:$0x1] %v353
        %v355 = vld [vmem:[%s306 + $0x78] sm:$0x1]
        %v356 = vsel %vm309, 0, %v355
        %357 = vst [vmem:[%s306 + $0x78] sm:$0x1] %v356
        %vm358 = vcmask 781827
        %vm359 = vsmask.f32 7950
        %vm360 = vmand %vm358, %vm359
        %v361 = vld [vmem:[%s306 + $0x4] sm:$0x8]
        %v362 = vsel %vm360, 0, %v361
        %363 = vst [vmem:[%s306 + $0x4] sm:$0x8] %v362
        %v364 = vld [vmem:[%s306 + $0xc] sm:$0x8]
        %v365 = vsel %vm360, 0, %v364
        %366 = vst [vmem:[%s306 + $0xc] sm:$0x8] %v365
        %v367 = vld [vmem:[%s306 + $0x14] sm:$0x8]
        %v368 = vsel %vm360, 0, %v367
        %369 = vst [vmem:[%s306 + $0x14] sm:$0x8] %v368
        %v370 = vld [vmem:[%s306 + $0x1c] sm:$0x8]
        %v371 = vsel %vm360, 0, %v370
        %372 = vst [vmem:[%s306 + $0x1c] sm:$0x8] %v371
        %v373 = vld [vmem:[%s306 + $0x24] sm:$0x8]
        %v374 = vsel %vm360, 0, %v373
        %375 = vst [vmem:[%s306 + $0x24] sm:$0x8] %v374
        %v376 = vld [vmem:[%s306 + $0x2c] sm:$0x8]
        %v377 = vsel %vm360, 0, %v376
        %378 = vst [vmem:[%s306 + $0x2c] sm:$0x8] %v377
        %v379 = vld [vmem:[%s306 + $0x34] sm:$0x8]
        %v380 = vsel %vm360, 0, %v379
        %381 = vst [vmem:[%s306 + $0x34] sm:$0x8] %v380
        %v382 = vld [vmem:[%s306 + $0x3c] sm:$0x8]
        %v383 = vsel %vm360, 0, %v382
        %384 = vst [vmem:[%s306 + $0x3c] sm:$0x8] %v383
        %v385 = vld [vmem:[%s306 + $0x44] sm:$0x8]
        %v386 = vsel %vm360, 0, %v385
        %387 = vst [vmem:[%s306 + $0x44] sm:$0x8] %v386
        %v388 = vld [vmem:[%s306 + $0x4c] sm:$0x8]
        %v389 = vsel %vm360, 0, %v388
        %390 = vst [vmem:[%s306 + $0x4c] sm:$0x8] %v389
        %v391 = vld [vmem:[%s306 + $0x54] sm:$0x8]
        %v392 = vsel %vm360, 0, %v391
        %393 = vst [vmem:[%s306 + $0x54] sm:$0x8] %v392
        %v394 = vld [vmem:[%s306 + $0x5c] sm:$0x8]
        %v395 = vsel %vm360, 0, %v394
        %396 = vst [vmem:[%s306 + $0x5c] sm:$0x8] %v395
        %v397 = vld [vmem:[%s306 + $0x64] sm:$0x8]
        %v398 = vsel %vm360, 0, %v397
        %399 = vst [vmem:[%s306 + $0x64] sm:$0x8] %v398
        %v400 = vld [vmem:[%s306 + $0x6c] sm:$0x8]
        %v401 = vsel %vm360, 0, %v400
        %402 = vst [vmem:[%s306 + $0x6c] sm:$0x8] %v401
        %v403 = vld [vmem:[%s306 + $0x74] sm:$0x8]
        %v404 = vsel %vm360, 0, %v403
        %405 = vst [vmem:[%s306 + $0x74] sm:$0x8] %v404
        %v406 = vld [vmem:[%s306 + $0x7c] sm:$0x8]
        %v407 = vsel %vm360, 0, %v406
        %408 = vst [vmem:[%s306 + $0x7c] sm:$0x8] %v407
        %v409 = vld [vmem:[%s267] sm:$0xff]
        %v410 = vld [vmem:[%s267 + $0x8] sm:$0xff]
        %v411 = vld [vmem:[%s267 + $0x10] sm:$0xff]
        %v412 = vld [vmem:[%s267 + $0x18] sm:$0xff]
        %v413 = vld [vmem:[%s267 + $0x20] sm:$0xff]
        %v414 = vld [vmem:[%s267 + $0x28] sm:$0xff]
        %v415 = vld [vmem:[%s267 + $0x30] sm:$0xff]
        %v416 = vld [vmem:[%s267 + $0x38] sm:$0xff]
        %v417 = vld [vmem:[%s267 + $0x40] sm:$0xff]
        %v418 = vld [vmem:[%s267 + $0x48] sm:$0xff]
        %v419 = vld [vmem:[%s267 + $0x50] sm:$0xff]
        %v420 = vld [vmem:[%s267 + $0x58] sm:$0xff]
        %v421 = vld [vmem:[%s267 + $0x60] sm:$0xff]
        %v422 = vld [vmem:[%s267 + $0x68] sm:$0xff]
        %v423 = vld [vmem:[%s267 + $0x70] sm:$0xff]
        %v424 = vld [vmem:[%s267 + $0x78] sm:$0xff]
        %v425 = vld [vmem:[%s267 + $0x80] sm:$0xff]
        %v426 = vld [vmem:[%s267 + $0x88] sm:$0xff]
        %v427 = vld [vmem:[%s267 + $0x90] sm:$0xff]
        %v428 = vld [vmem:[%s267 + $0x98] sm:$0xff]
        %v429 = vld [vmem:[%s267 + $0xa0] sm:$0xff]
        %v430 = vld [vmem:[%s267 + $0xa8] sm:$0xff]
        %v431 = vld [vmem:[%s267 + $0xb0] sm:$0xff]
        %v432 = vld [vmem:[%s267 + $0xb8] sm:$0xff]
        %v433 = vld [vmem:[%s267 + $0xc0] sm:$0xff]
        %v434 = vld [vmem:[%s267 + $0xc8] sm:$0xff]
        %v435 = vld [vmem:[%s267 + $0xd0] sm:$0xff]
        %v436 = vld [vmem:[%s267 + $0xd8] sm:$0xff]
        %v437 = vld [vmem:[%s267 + $0xe0] sm:$0xff]
        %v438 = vld [vmem:[%s267 + $0xe8] sm:$0xff]
        %v439 = vld [vmem:[%s267 + $0xf0] sm:$0xff]
        %v440 = vld [vmem:[%s267 + $0xf8] sm:$0xff]
        %v441 = vpack.c.bf16 %v410, %v409
        %v442 = vpack.c.bf16 %v412, %v411
        %v443 = vpack.c.bf16 %v414, %v413
        %v444 = vpack.c.bf16 %v416, %v415
        %v445 = vpack.c.bf16 %v418, %v417
        %v446 = vpack.c.bf16 %v420, %v419
        %v447 = vpack.c.bf16 %v422, %v421
        %v448 = vpack.c.bf16 %v424, %v423
        %v449 = vpack.c.bf16 %v426, %v425
        %v450 = vpack.c.bf16 %v428, %v427
        %v451 = vpack.c.bf16 %v430, %v429
        %v452 = vpack.c.bf16 %v432, %v431
        %v453 = vpack.c.bf16 %v434, %v433
        %v454 = vpack.c.bf16 %v436, %v435
        %v455 = vpack.c.bf16 %v438, %v437
        %v456 = vpack.c.bf16 %v440, %v439
        %v457 = vld [vmem:[%s1] sm:$0xf]
        %v458 = vld [vmem:[%s1 + $0x4] sm:$0xf]
        %v459 = vld [vmem:[%s1 + $0x8] sm:$0xf]
        %v460 = vld [vmem:[%s1 + $0xc] sm:$0xf]
        %v461 = vld [vmem:[%s1 + $0x10] sm:$0xf]
        %v462 = vld [vmem:[%s1 + $0x14] sm:$0xf]
        %v463 = vld [vmem:[%s1 + $0x18] sm:$0xf]
        %v464 = vld [vmem:[%s1 + $0x1c] sm:$0xf]
        %v465 = vld [vmem:[%s1 + $0x20] sm:$0xf]
        %v466 = vld [vmem:[%s1 + $0x24] sm:$0xf]
        %v467 = vld [vmem:[%s1 + $0x28] sm:$0xf]
        %v468 = vld [vmem:[%s1 + $0x2c] sm:$0xf]
        %v469 = vld [vmem:[%s1 + $0x30] sm:$0xf]
        %v470 = vld [vmem:[%s1 + $0x34] sm:$0xf]
        %v471 = vld [vmem:[%s1 + $0x38] sm:$0xf]
        %v472 = vld [vmem:[%s1 + $0x3c] sm:$0xf]
        %v473 = vld [vmem:[%s2] sm:$0x1]
        %v475 = vperm.slane %v473, 0
        %v493 = vunpack.c.l.b16 %v457
        %v494 = vunpack.c.l.b16 %v458
        %v495 = vunpack.c.l.b16 %v459
        %v496 = vunpack.c.l.b16 %v460
        %v497 = vunpack.c.l.b16 %v461
        %v498 = vunpack.c.l.b16 %v462
        %v499 = vunpack.c.l.b16 %v463
        %v500 = vunpack.c.l.b16 %v464
        %v501 = vunpack.c.l.b16 %v465
        %v502 = vunpack.c.l.b16 %v466
        %v503 = vunpack.c.l.b16 %v467
        %v504 = vunpack.c.l.b16 %v468
        %v505 = vunpack.c.l.b16 %v469
        %v506 = vunpack.c.l.b16 %v470
        %v507 = vunpack.c.l.b16 %v471
        %v508 = vunpack.c.l.b16 %v472
        %v509 = vpack.c.b16 %v494, %v493
        %v510 = vpack.c.b16 %v496, %v495
        %v511 = vpack.c.b16 %v498, %v497
        %v512 = vpack.c.b16 %v500, %v499
        %v513 = vpack.c.b16 %v502, %v501
        %v514 = vpack.c.b16 %v504, %v503
        %v515 = vpack.c.b16 %v506, %v505
        %v516 = vpack.c.b16 %v508, %v507
        %525 = vmatpush.bf16.msra.mxu0 %v516
        %526 = vmatpush.bf16.msra.mxu0 %v515
        %527 = vmatpush.bf16.msra.mxu0 %v514
        %528 = vmatpush.bf16.msra.mxu0 %v513
        %529 = vmatpush.bf16.msra.mxu0 %v512
        %530 = vmatpush.bf16.msra.mxu0 %v511
        %531 = vmatpush.bf16.msra.mxu0 %v510
        %532 = vmatpush.bf16.msra.mxu0 %v509
        %533 = vmatmul.bf16.gmra.mxu0 %v441
        %v534 = vpop.f32.mrf.mxu0
        %v535 = vadd.f32 %v475, %v534
        %v536 = vpop.f32.mrf.mxu0
        %v537 = vadd.f32 %v475, %v536
        %538 = vmatmul.bf16.gmra.mxu0 %v442
        %v539 = vpop.f32.mrf.mxu0
        %v540 = vadd.f32 %v475, %v539
        %v541 = vpop.f32.mrf.mxu0
        %v542 = vadd.f32 %v475, %v541
        %543 = vmatmul.bf16.gmra.mxu0 %v443
        %v544 = vpop.f32.mrf.mxu0
        %v545 = vadd.f32 %v475, %v544
        %v546 = vpop.f32.mrf.mxu0
        %v547 = vadd.f32 %v475, %v546
        %548 = vmatmul.bf16.gmra.mxu0 %v444
        %v549 = vpop.f32.mrf.mxu0
        %v550 = vadd.f32 %v475, %v549
        %v551 = vpop.f32.mrf.mxu0
        %v552 = vadd.f32 %v475, %v551
        %553 = vmatmul.bf16.gmra.mxu0 %v445
        %v554 = vpop.f32.mrf.mxu0
        %v555 = vadd.f32 %v475, %v554
        %v556 = vpop.f32.mrf.mxu0
        %v557 = vadd.f32 %v475, %v556
        %558 = vmatmul.bf16.gmra.mxu0 %v446
        %v559 = vpop.f32.mrf.mxu0
        %v560 = vadd.f32 %v475, %v559
        %v561 = vpop.f32.mrf.mxu0
        %v562 = vadd.f32 %v475, %v561
        %563 = vmatmul.bf16.gmra.mxu0 %v447
        %v564 = vpop.f32.mrf.mxu0
        %v565 = vadd.f32 %v475, %v564
        %v566 = vpop.f32.mrf.mxu0
        %v567 = vadd.f32 %v475, %v566
        %568 = vmatmul.bf16.gmra.mxu0 %v448
        %v569 = vpop.f32.mrf.mxu0
        %v570 = vadd.f32 %v475, %v569
        %v571 = vpop.f32.mrf.mxu0
        %v572 = vadd.f32 %v475, %v571
        %573 = vmatmul.bf16.gmra.mxu0 %v449
        %v574 = vpop.f32.mrf.mxu0
        %v575 = vadd.f32 %v475, %v574
        %v576 = vpop.f32.mrf.mxu0
        %v577 = vadd.f32 %v475, %v576
        %578 = vmatmul.bf16.gmra.mxu0 %v450
        %v579 = vpop.f32.mrf.mxu0
        %v580 = vadd.f32 %v475, %v579
        %v581 = vpop.f32.mrf.mxu0
        %v582 = vadd.f32 %v475, %v581
        %583 = vmatmul.bf16.gmra.mxu0 %v451
        %v584 = vpop.f32.mrf.mxu0
        %v585 = vadd.f32 %v475, %v584
        %v586 = vpop.f32.mrf.mxu0
        %v587 = vadd.f32 %v475, %v586
        %588 = vmatmul.bf16.gmra.mxu0 %v452
        %v589 = vpop.f32.mrf.mxu0
        %v590 = vadd.f32 %v475, %v589
        %v591 = vpop.f32.mrf.mxu0
        %v592 = vadd.f32 %v475, %v591
        %593 = vmatmul.bf16.gmra.mxu0 %v453
        %v594 = vpop.f32.mrf.mxu0
        %v595 = vadd.f32 %v475, %v594
        %v596 = vpop.f32.mrf.mxu0
        %v597 = vadd.f32 %v475, %v596
        %598 = vmatmul.bf16.gmra.mxu0 %v454
        %v599 = vpop.f32.mrf.mxu0
        %v600 = vadd.f32 %v475, %v599
        %v601 = vpop.f32.mrf.mxu0
        %v602 = vadd.f32 %v475, %v601
        %603 = vmatmul.bf16.gmra.mxu0 %v455
        %v604 = vpop.f32.mrf.mxu0
        %v605 = vadd.f32 %v475, %v604
        %v606 = vpop.f32.mrf.mxu0
        %v607 = vadd.f32 %v475, %v606
        %608 = vmatmul.bf16.gmra.mxu0 %v456
        %v609 = vpop.f32.mrf.mxu0
        %v610 = vadd.f32 %v475, %v609
        %v611 = vpop.f32.mrf.mxu0
        %v612 = vadd.f32 %v475, %v611
        %613 = vdwg.mxu0
        %v614 = vmax.f32 %v535, 0.0
        %v615 = vmax.f32 %v537, 0.0
        %v616 = vmax.f32 %v540, 0.0
        %v617 = vmax.f32 %v542, 0.0
        %v618 = vmax.f32 %v545, 0.0
        %v619 = vmax.f32 %v547, 0.0
        %v620 = vmax.f32 %v550, 0.0
        %v621 = vmax.f32 %v552, 0.0
        %v622 = vmax.f32 %v555, 0.0
        %v623 = vmax.f32 %v557, 0.0
        %v624 = vmax.f32 %v560, 0.0
        %v625 = vmax.f32 %v562, 0.0
        %v626 = vmax.f32 %v565, 0.0
        %v627 = vmax.f32 %v567, 0.0
        %v628 = vmax.f32 %v570, 0.0
        %v629 = vmax.f32 %v572, 0.0
        %v630 = vmax.f32 %v575, 0.0
        %v631 = vmax.f32 %v577, 0.0
        %v632 = vmax.f32 %v580, 0.0
        %v633 = vmax.f32 %v582, 0.0
        %v634 = vmax.f32 %v585, 0.0
        %v635 = vmax.f32 %v587, 0.0
        %v636 = vmax.f32 %v590, 0.0
        %v637 = vmax.f32 %v592, 0.0
        %v638 = vmax.f32 %v595, 0.0
        %v639 = vmax.f32 %v597, 0.0
        %v640 = vmax.f32 %v600, 0.0
        %v641 = vmax.f32 %v602, 0.0
        %v642 = vmax.f32 %v605, 0.0
        %v643 = vmax.f32 %v607, 0.0
        %v644 = vmax.f32 %v610, 0.0
        %v645 = vmax.f32 %v612, 0.0
        %v646 = vpack.c.bf16 %v614, %v614
        %v647 = vpack.c.bf16 %v615, %v615
        %v648 = vpack.c.bf16 %v616, %v616
        %v649 = vpack.c.bf16 %v617, %v617
        %v650 = vpack.c.bf16 %v618, %v618
        %v651 = vpack.c.bf16 %v619, %v619
        %v652 = vpack.c.bf16 %v620, %v620
        %v653 = vpack.c.bf16 %v621, %v621
        %v654 = vpack.c.bf16 %v622, %v622
        %v655 = vpack.c.bf16 %v623, %v623
        %v656 = vpack.c.bf16 %v624, %v624
        %v657 = vpack.c.bf16 %v625, %v625
        %v658 = vpack.c.bf16 %v626, %v626
        %v659 = vpack.c.bf16 %v627, %v627
        %v660 = vpack.c.bf16 %v628, %v628
        %v661 = vpack.c.bf16 %v629, %v629
        %v662 = vpack.c.bf16 %v630, %v630
        %v663 = vpack.c.bf16 %v631, %v631
        %v664 = vpack.c.bf16 %v632, %v632
        %v665 = vpack.c.bf16 %v633, %v633
        %v666 = vpack.c.bf16 %v634, %v634
        %v667 = vpack.c.bf16 %v635, %v635
        %v668 = vpack.c.bf16 %v636, %v636
        %v669 = vpack.c.bf16 %v637, %v637
        %v670 = vpack.c.bf16 %v638, %v638
        %v671 = vpack.c.bf16 %v639, %v639
        %v672 = vpack.c.bf16 %v640, %v640
        %v673 = vpack.c.bf16 %v641, %v641
        %v674 = vpack.c.bf16 %v642, %v642
        %v675 = vpack.c.bf16 %v643, %v643
        %v676 = vpack.c.bf16 %v644, %v644
        %v677 = vpack.c.bf16 %v645, %v645
        %710 = vrot.lane.b32.xlu0 %v646, 32
        %v711 = vpop.permute.xlu0 %710
        %712 = vrot.lane.b32.xlu0 %v647, 32
        %v713 = vpop.permute.xlu0 %712
        %714 = vrot.lane.b32.xlu0 %v648, 32
        %v715 = vpop.permute.xlu0 %714
        %716 = vrot.lane.b32.xlu0 %v649, 32
        %v717 = vpop.permute.xlu0 %716
        %718 = vrot.lane.b32.xlu0 %v650, 32
        %v719 = vpop.permute.xlu0 %718
        %720 = vrot.lane.b32.xlu0 %v651, 32
        %v721 = vpop.permute.xlu0 %720
        %722 = vrot.lane.b32.xlu0 %v652, 32
        %v723 = vpop.permute.xlu0 %722
        %724 = vrot.lane.b32.xlu0 %v653, 32
        %v725 = vpop.permute.xlu0 %724
        %726 = vrot.lane.b32.xlu0 %v654, 32
        %v727 = vpop.permute.xlu0 %726
        %728 = vrot.lane.b32.xlu0 %v655, 32
        %v729 = vpop.permute.xlu0 %728
        %730 = vrot.lane.b32.xlu0 %v656, 32
        %v731 = vpop.permute.xlu0 %730
        %732 = vrot.lane.b32.xlu0 %v657, 32
        %v733 = vpop.permute.xlu0 %732
        %734 = vrot.lane.b32.xlu0 %v658, 32
        %v735 = vpop.permute.xlu0 %734
        %736 = vrot.lane.b32.xlu0 %v659, 32
        %v737 = vpop.permute.xlu0 %736
        %738 = vrot.lane.b32.xlu0 %v660, 32
        %v739 = vpop.permute.xlu0 %738
        %740 = vrot.lane.b32.xlu0 %v661, 32
        %v741 = vpop.permute.xlu0 %740
        %742 = vrot.lane.b32.xlu0 %v662, 32
        %v743 = vpop.permute.xlu0 %742
        %744 = vrot.lane.b32.xlu0 %v663, 32
        %v745 = vpop.permute.xlu0 %744
        %746 = vrot.lane.b32.xlu0 %v664, 32
        %v747 = vpop.permute.xlu0 %746
        %748 = vrot.lane.b32.xlu0 %v665, 32
        %v749 = vpop.permute.xlu0 %748
        %750 = vrot.lane.b32.xlu0 %v666, 32
        %v751 = vpop.permute.xlu0 %750
        %752 = vrot.lane.b32.xlu0 %v667, 32
        %v753 = vpop.permute.xlu0 %752
        %754 = vrot.lane.b32.xlu0 %v668, 32
        %v755 = vpop.permute.xlu0 %754
        %756 = vrot.lane.b32.xlu0 %v669, 32
        %v757 = vpop.permute.xlu0 %756
        %758 = vrot.lane.b32.xlu0 %v670, 32
        %v759 = vpop.permute.xlu0 %758
        %760 = vrot.lane.b32.xlu0 %v671, 32
        %v761 = vpop.permute.xlu0 %760
        %762 = vrot.lane.b32.xlu0 %v672, 32
        %v763 = vpop.permute.xlu0 %762
        %764 = vrot.lane.b32.xlu0 %v673, 32
        %v765 = vpop.permute.xlu0 %764
        %766 = vrot.lane.b32.xlu0 %v674, 32
        %v767 = vpop.permute.xlu0 %766
        %768 = vrot.lane.b32.xlu0 %v675, 32
        %v769 = vpop.permute.xlu0 %768
        %770 = vrot.lane.b32.xlu0 %v676, 32
        %v771 = vpop.permute.xlu0 %770
        %772 = vrot.lane.b32.xlu0 %v677, 32
        %v773 = vpop.permute.xlu0 %772
        %vm806 = vcmask 519424
        %807 = vst.msk [vmem:[%s306] sm:$0xf] %vm806, %v711
        %808 = vst.msk [vmem:[%s306 + $0x4] sm:$0xf] %vm806, %v713
        %809 = vst.msk [vmem:[%s306 + $0x8] sm:$0xf] %vm806, %v715
        %810 = vst.msk [vmem:[%s306 + $0xc] sm:$0xf] %vm806, %v717
        %811 = vst.msk [vmem:[%s306 + $0x10] sm:$0xf] %vm806, %v719
        %812 = vst.msk [vmem:[%s306 + $0x14] sm:$0xf] %vm806, %v721
        %813 = vst.msk [vmem:[%s306 + $0x18] sm:$0xf] %vm806, %v723
        %814 = vst.msk [vmem:[%s306 + $0x1c] sm:$0xf] %vm806, %v725
        %815 = vst.msk [vmem:[%s306 + $0x20] sm:$0xf] %vm806, %v727
        %816 = vst.msk [vmem:[%s306 + $0x24] sm:$0xf] %vm806, %v729
        %817 = vst.msk [vmem:[%s306 + $0x28] sm:$0xf] %vm806, %v731
        %818 = vst.msk [vmem:[%s306 + $0x2c] sm:$0xf] %vm806, %v733
        %819 = vst.msk [vmem:[%s306 + $0x30] sm:$0xf] %vm806, %v735
        %820 = vst.msk [vmem:[%s306 + $0x34] sm:$0xf] %vm806, %v737
        %821 = vst.msk [vmem:[%s306 + $0x38] sm:$0xf] %vm806, %v739
        %822 = vst.msk [vmem:[%s306 + $0x3c] sm:$0xf] %vm806, %v741
        %823 = vst.msk [vmem:[%s306 + $0x40] sm:$0xf] %vm806, %v743
        %824 = vst.msk [vmem:[%s306 + $0x44] sm:$0xf] %vm806, %v745
        %825 = vst.msk [vmem:[%s306 + $0x48] sm:$0xf] %vm806, %v747
        %826 = vst.msk [vmem:[%s306 + $0x4c] sm:$0xf] %vm806, %v749
        %827 = vst.msk [vmem:[%s306 + $0x50] sm:$0xf] %vm806, %v751
        %828 = vst.msk [vmem:[%s306 + $0x54] sm:$0xf] %vm806, %v753
        %829 = vst.msk [vmem:[%s306 + $0x58] sm:$0xf] %vm806, %v755
        %830 = vst.msk [vmem:[%s306 + $0x5c] sm:$0xf] %vm806, %v757
        %831 = vst.msk [vmem:[%s306 + $0x60] sm:$0xf] %vm806, %v759
        %832 = vst.msk [vmem:[%s306 + $0x64] sm:$0xf] %vm806, %v761
        %833 = vst.msk [vmem:[%s306 + $0x68] sm:$0xf] %vm806, %v763
        %834 = vst.msk [vmem:[%s306 + $0x6c] sm:$0xf] %vm806, %v765
        %835 = vst.msk [vmem:[%s306 + $0x70] sm:$0xf] %vm806, %v767
        %836 = vst.msk [vmem:[%s306 + $0x74] sm:$0xf] %vm806, %v769
        %837 = vst.msk [vmem:[%s306 + $0x78] sm:$0xf] %vm806, %v771
        %838 = vst.msk [vmem:[%s306 + $0x7c] sm:$0xf] %vm806, %v773
        %vm839 = vsmask.f32 4368
        %vm840 = vmor %vm308, %vm839
        %v842 = vshrl.u32 %v646, 16
        %v844 = vrot.slane %v842, 7
        %v845 = vshll.u32 %v646, 16
        %v847 = vor.u32 %v844, %v845
        %v848 = vrot.slane %v844, 4
        %v850 = vshrl.u32 %v647, 16
        %v852 = vrot.slane %v850, 7
        %v853 = vshll.u32 %v647, 16
        %v855 = vor.u32 %v852, %v853
        %v856 = vsel %vm840, %v848, %v855
        %v858 = vshrl.u32 %v648, 16
        %v860 = vrot.slane %v858, 7
        %v861 = vshll.u32 %v648, 16
        %v863 = vor.u32 %v860, %v861
        %v864 = vrot.slane %v860, 4
        %v866 = vshrl.u32 %v649, 16
        %v868 = vrot.slane %v866, 7
        %v869 = vshll.u32 %v649, 16
        %v871 = vor.u32 %v868, %v869
        %v872 = vsel %vm840, %v864, %v871
        %v874 = vshrl.u32 %v650, 16
        %v876 = vrot.slane %v874, 7
        %v877 = vshll.u32 %v650, 16
        %v879 = vor.u32 %v876, %v877
        %v880 = vrot.slane %v876, 4
        %v882 = vshrl.u32 %v651, 16
        %v884 = vrot.slane %v882, 7
        %v885 = vshll.u32 %v651, 16
        %v887 = vor.u32 %v884, %v885
        %v888 = vsel %vm840, %v880, %v887
        %v890 = vshrl.u32 %v652, 16
        %v892 = vrot.slane %v890, 7
        %v893 = vshll.u32 %v652, 16
        %v895 = vor.u32 %v892, %v893
        %v896 = vrot.slane %v892, 4
        %v898 = vshrl.u32 %v653, 16
        %v900 = vrot.slane %v898, 7
        %v901 = vshll.u32 %v653, 16
        %v903 = vor.u32 %v900, %v901
        %v904 = vsel %vm840, %v896, %v903
        %v906 = vshrl.u32 %v654, 16
        %v908 = vrot.slane %v906, 7
        %v909 = vshll.u32 %v654, 16
        %v911 = vor.u32 %v908, %v909
        %v912 = vrot.slane %v908, 4
        %v914 = vshrl.u32 %v655, 16
        %v916 = vrot.slane %v914, 7
        %v917 = vshll.u32 %v655, 16
        %v919 = vor.u32 %v916, %v917
        %v920 = vsel %vm840, %v912, %v919
        %v922 = vshrl.u32 %v656, 16
        %v924 = vrot.slane %v922, 7
        %v925 = vshll.u32 %v656, 16
        %v927 = vor.u32 %v924, %v925
        %v928 = vrot.slane %v924, 4
        %v930 = vshrl.u32 %v657, 16
        %v932 = vrot.slane %v930, 7
        %v933 = vshll.u32 %v657, 16
        %v935 = vor.u32 %v932, %v933
        %v936 = vsel %vm840, %v928, %v935
        %v938 = vshrl.u32 %v658, 16
        %v940 = vrot.slane %v938, 7
        %v941 = vshll.u32 %v658, 16
        %v943 = vor.u32 %v940, %v941
        %v944 = vrot.slane %v940, 4
        %v946 = vshrl.u32 %v659, 16
        %v948 = vrot.slane %v946, 7
        %v949 = vshll.u32 %v659, 16
        %v951 = vor.u32 %v948, %v949
        %v952 = vsel %vm840, %v944, %v951
        %v954 = vshrl.u32 %v660, 16
        %v956 = vrot.slane %v954, 7
        %v957 = vshll.u32 %v660, 16
        %v959 = vor.u32 %v956, %v957
        %v960 = vrot.slane %v956, 4
        %v962 = vshrl.u32 %v661, 16
        %v964 = vrot.slane %v962, 7
        %v965 = vshll.u32 %v661, 16
        %v967 = vor.u32 %v964, %v965
        %v968 = vsel %vm840, %v960, %v967
        %v970 = vshrl.u32 %v662, 16
        %v972 = vrot.slane %v970, 7
        %v973 = vshll.u32 %v662, 16
        %v975 = vor.u32 %v972, %v973
        %v976 = vrot.slane %v972, 4
        %v978 = vshrl.u32 %v663, 16
        %v980 = vrot.slane %v978, 7
        %v981 = vshll.u32 %v663, 16
        %v983 = vor.u32 %v980, %v981
        %v984 = vsel %vm840, %v976, %v983
        %v986 = vshrl.u32 %v664, 16
        %v988 = vrot.slane %v986, 7
        %v989 = vshll.u32 %v664, 16
        %v991 = vor.u32 %v988, %v989
        %v992 = vrot.slane %v988, 4
        %v994 = vshrl.u32 %v665, 16
        %v996 = vrot.slane %v994, 7
        %v997 = vshll.u32 %v665, 16
        %v999 = vor.u32 %v996, %v997
        %v1000 = vsel %vm840, %v992, %v999
        %v1002 = vshrl.u32 %v666, 16
        %v1004 = vrot.slane %v1002, 7
        %v1005 = vshll.u32 %v666, 16
        %v1007 = vor.u32 %v1004, %v1005
        %v1008 = vrot.slane %v1004, 4
        %v1010 = vshrl.u32 %v667, 16
        %v1012 = vrot.slane %v1010, 7
        %v1013 = vshll.u32 %v667, 16
        %v1015 = vor.u32 %v1012, %v1013
        %v1016 = vsel %vm840, %v1008, %v1015
        %v1018 = vshrl.u32 %v668, 16
        %v1020 = vrot.slane %v1018, 7
        %v1021 = vshll.u32 %v668, 16
        %v1023 = vor.u32 %v1020, %v1021
        %v1024 = vrot.slane %v1020, 4
        %v1026 = vshrl.u32 %v669, 16
        %v1028 = vrot.slane %v1026, 7
        %v1029 = vshll.u32 %v669, 16
        %v1031 = vor.u32 %v1028, %v1029
        %v1032 = vsel %vm840, %v1024, %v1031
        %v1034 = vshrl.u32 %v670, 16
        %v1036 = vrot.slane %v1034, 7
        %v1037 = vshll.u32 %v670, 16
        %v1039 = vor.u32 %v1036, %v1037
        %v1040 = vrot.slane %v1036, 4
        %v1042 = vshrl.u32 %v671, 16
        %v1044 = vrot.slane %v1042, 7
        %v1045 = vshll.u32 %v671, 16
        %v1047 = vor.u32 %v1044, %v1045
        %v1048 = vsel %vm840, %v1040, %v1047
        %v1050 = vshrl.u32 %v672, 16
        %v1052 = vrot.slane %v1050, 7
        %v1053 = vshll.u32 %v672, 16
        %v1055 = vor.u32 %v1052, %v1053
        %v1056 = vrot.slane %v1052, 4
        %v1058 = vshrl.u32 %v673, 16
        %v1060 = vrot.slane %v1058, 7
        %v1061 = vshll.u32 %v673, 16
        %v1063 = vor.u32 %v1060, %v1061
        %v1064 = vsel %vm840, %v1056, %v1063
        %v1066 = vshrl.u32 %v674, 16
        %v1068 = vrot.slane %v1066, 7
        %v1069 = vshll.u32 %v674, 16
        %v1071 = vor.u32 %v1068, %v1069
        %v1072 = vrot.slane %v1068, 4
        %v1074 = vshrl.u32 %v675, 16
        %v1076 = vrot.slane %v1074, 7
        %v1077 = vshll.u32 %v675, 16
        %v1079 = vor.u32 %v1076, %v1077
        %v1080 = vsel %vm840, %v1072, %v1079
        %v1082 = vshrl.u32 %v676, 16
        %v1084 = vrot.slane %v1082, 7
        %v1085 = vshll.u32 %v676, 16
        %v1087 = vor.u32 %v1084, %v1085
        %v1088 = vrot.slane %v1084, 4
        %v1090 = vshrl.u32 %v677, 16
        %v1092 = vrot.slane %v1090, 7
        %v1093 = vshll.u32 %v677, 16
        %v1095 = vor.u32 %v1092, %v1093
        %v1096 = vsel %vm840, %v1088, %v1095
        %vm1129 = vcmask 257024
        %vm1130 = vsmask.f32 7938
        %vm1131 = vmand %vm1129, %vm1130
        %v1132 = vld [vmem:[%s306] sm:$0xf]
        %v1133 = vsel %vm1131, %v847, %v1132
        %1134 = vst [vmem:[%s306] sm:$0xf] %v1133
        %vm1135 = vcmask 257024
        %1136 = vst.msk [vmem:[%s306 + $0x4] sm:$0xf] %vm1135, %v856
        %v1137 = vld [vmem:[%s306 + $0x8] sm:$0xf]
        %v1138 = vsel %vm1131, %v863, %v1137
        %1139 = vst [vmem:[%s306 + $0x8] sm:$0xf] %v1138
        %1140 = vst.msk [vmem:[%s306 + $0xc] sm:$0xf] %vm1135, %v872
        %v1141 = vld [vmem:[%s306 + $0x10] sm:$0xf]
        %v1142 = vsel %vm1131, %v879, %v1141
        %1143 = vst [vmem:[%s306 + $0x10] sm:$0xf] %v1142
        %1144 = vst.msk [vmem:[%s306 + $0x14] sm:$0xf] %vm1135, %v888
        %v1145 = vld [vmem:[%s306 + $0x18] sm:$0xf]
        %v1146 = vsel %vm1131, %v895, %v1145
        %1147 = vst [vmem:[%s306 + $0x18] sm:$0xf] %v1146
        %1148 = vst.msk [vmem:[%s306 + $0x1c] sm:$0xf] %vm1135, %v904
        %v1149 = vld [vmem:[%s306 + $0x20] sm:$0xf]
        %v1150 = vsel %vm1131, %v911, %v1149
        %1151 = vst [vmem:[%s306 + $0x20] sm:$0xf] %v1150
        %1152 = vst.msk [vmem:[%s306 + $0x24] sm:$0xf] %vm1135, %v920
        %v1153 = vld [vmem:[%s306 + $0x28] sm:$0xf]
        %v1154 = vsel %vm1131, %v927, %v1153
        %1155 = vst [vmem:[%s306 + $0x28] sm:$0xf] %v1154
        %1156 = vst.msk [vmem:[%s306 + $0x2c] sm:$0xf] %vm1135, %v936
        %v1157 = vld [vmem:[%s306 + $0x30] sm:$0xf]
        %v1158 = vsel %vm1131, %v943, %v1157
        %1159 = vst [vmem:[%s306 + $0x30] sm:$0xf] %v1158
        %1160 = vst.msk [vmem:[%s306 + $0x34] sm:$0xf] %vm1135, %v952
        %v1161 = vld [vmem:[%s306 + $0x38] sm:$0xf]
        %v1162 = vsel %vm1131, %v959, %v1161
        %1163 = vst [vmem:[%s306 + $0x38] sm:$0xf] %v1162
        %1164 = vst.msk [vmem:[%s306 + $0x3c] sm:$0xf] %vm1135, %v968
        %v1165 = vld [vmem:[%s306 + $0x40] sm:$0xf]
        %v1166 = vsel %vm1131, %v975, %v1165
        %1167 = vst [vmem:[%s306 + $0x40] sm:$0xf] %v1166
        %1168 = vst.msk [vmem:[%s306 + $0x44] sm:$0xf] %vm1135, %v984
        %v1169 = vld [vmem:[%s306 + $0x48] sm:$0xf]
        %v1170 = vsel %vm1131, %v991, %v1169
        %1171 = vst [vmem:[%s306 + $0x48] sm:$0xf] %v1170
        %1172 = vst.msk [vmem:[%s306 + $0x4c] sm:$0xf] %vm1135, %v1000
        %v1173 = vld [vmem:[%s306 + $0x50] sm:$0xf]
        %v1174 = vsel %vm1131, %v1007, %v1173
        %1175 = vst [vmem:[%s306 + $0x50] sm:$0xf] %v1174
        %1176 = vst.msk [vmem:[%s306 + $0x54] sm:$0xf] %vm1135, %v1016
        %v1177 = vld [vmem:[%s306 + $0x58] sm:$0xf]
        %v1178 = vsel %vm1131, %v1023, %v1177
        %1179 = vst [vmem:[%s306 + $0x58] sm:$0xf] %v1178
        %1180 = vst.msk [vmem:[%s306 + $0x5c] sm:$0xf] %vm1135, %v1032
        %v1181 = vld [vmem:[%s306 + $0x60] sm:$0xf]
        %v1182 = vsel %vm1131, %v1039, %v1181
        %1183 = vst [vmem:[%s306 + $0x60] sm:$0xf] %v1182
        %1184 = vst.msk [vmem:[%s306 + $0x64] sm:$0xf] %vm1135, %v1048
        %v1185 = vld [vmem:[%s306 + $0x68] sm:$0xf]
        %v1186 = vsel %vm1131, %v1055, %v1185
        %1187 = vst [vmem:[%s306 + $0x68] sm:$0xf] %v1186
        %1188 = vst.msk [vmem:[%s306 + $0x6c] sm:$0xf] %vm1135, %v1064
        %v1189 = vld [vmem:[%s306 + $0x70] sm:$0xf]
        %v1190 = vsel %vm1131, %v1071, %v1189
        %1191 = vst [vmem:[%s306 + $0x70] sm:$0xf] %v1190
        %1192 = vst.msk [vmem:[%s306 + $0x74] sm:$0xf] %vm1135, %v1080
        %v1193 = vld [vmem:[%s306 + $0x78] sm:$0xf]
        %v1194 = vsel %vm1131, %v1087, %v1193
        %1195 = vst [vmem:[%s306 + $0x78] sm:$0xf] %v1194
        %1196 = vst.msk [vmem:[%s306 + $0x7c] sm:$0xf] %vm1135, %v1096
        %vm1197 = vsmask.f32 3328
        %vm1198 = vsmask.f32 7440
        %vm1199 = vmor %vm1197, %vm1198
        %v1200 = vrot.slane %v842, 4
        %v1201 = vrot.slane %v845, 5
        %v1202 = vor.u32 %v1200, %v1201
        %v1203 = vrot.slane %v1202, 4
        %v1204 = vrot.slane %v853, 5
        %v1205 = vsel %vm1199, %v1203, %v1204
        %v1206 = vrot.slane %v850, 4
        %v1207 = vor.u32 %v1206, %v1204
        %v1208 = vrot.slane %v1207, 4
        %v1209 = vrot.slane %v858, 4
        %v1210 = vrot.slane %v861, 5
        %v1211 = vor.u32 %v1209, %v1210
        %v1212 = vrot.slane %v1211, 4
        %v1213 = vrot.slane %v869, 5
        %v1214 = vsel %vm1199, %v1212, %v1213
        %v1215 = vrot.slane %v866, 4
        %v1216 = vor.u32 %v1215, %v1213
        %v1217 = vrot.slane %v1216, 4
        %v1218 = vrot.slane %v874, 4
        %v1219 = vrot.slane %v877, 5
        %v1220 = vor.u32 %v1218, %v1219
        %v1221 = vrot.slane %v1220, 4
        %v1222 = vrot.slane %v885, 5
        %v1223 = vsel %vm1199, %v1221, %v1222
        %v1224 = vrot.slane %v882, 4
        %v1225 = vor.u32 %v1224, %v1222
        %v1226 = vrot.slane %v1225, 4
        %v1227 = vrot.slane %v890, 4
        %v1228 = vrot.slane %v893, 5
        %v1229 = vor.u32 %v1227, %v1228
        %v1230 = vrot.slane %v1229, 4
        %v1231 = vrot.slane %v901, 5
        %v1232 = vsel %vm1199, %v1230, %v1231
        %v1233 = vrot.slane %v898, 4
        %v1234 = vor.u32 %v1233, %v1231
        %v1235 = vrot.slane %v1234, 4
        %v1236 = vrot.slane %v906, 4
        %v1237 = vrot.slane %v909, 5
        %v1238 = vor.u32 %v1236, %v1237
        %v1239 = vrot.slane %v1238, 4
        %v1240 = vrot.slane %v917, 5
        %v1241 = vsel %vm1199, %v1239, %v1240
        %v1242 = vrot.slane %v914, 4
        %v1243 = vor.u32 %v1242, %v1240
        %v1244 = vrot.slane %v1243, 4
        %v1245 = vrot.slane %v922, 4
        %v1246 = vrot.slane %v925, 5
        %v1247 = vor.u32 %v1245, %v1246
        %v1248 = vrot.slane %v1247, 4
        %v1249 = vrot.slane %v933, 5
        %v1250 = vsel %vm1199, %v1248, %v1249
        %v1251 = vrot.slane %v930, 4
        %v1252 = vor.u32 %v1251, %v1249
        %v1253 = vrot.slane %v1252, 4
        %v1254 = vrot.slane %v938, 4
        %v1255 = vrot.slane %v941, 5
        %v1256 = vor.u32 %v1254, %v1255
        %v1257 = vrot.slane %v1256, 4
        %v1258 = vrot.slane %v949, 5
        %v1259 = vsel %vm1199, %v1257, %v1258
        %v1260 = vrot.slane %v946, 4
        %v1261 = vor.u32 %v1260, %v1258
        %v1262 = vrot.slane %v1261, 4
        %v1263 = vrot.slane %v954, 4
        %v1264 = vrot.slane %v957, 5
        %v1265 = vor.u32 %v1263, %v1264
        %v1266 = vrot.slane %v1265, 4
        %v1267 = vrot.slane %v965, 5
        %v1268 = vsel %vm1199, %v1266, %v1267
        %v1269 = vrot.slane %v962, 4
        %v1270 = vor.u32 %v1269, %v1267
        %v1271 = vrot.slane %v1270, 4
        %v1272 = vrot.slane %v970, 4
        %v1273 = vrot.slane %v973, 5
        %v1274 = vor.u32 %v1272, %v1273
        %v1275 = vrot.slane %v1274, 4
        %v1276 = vrot.slane %v981, 5
        %v1277 = vsel %vm1199, %v1275, %v1276
        %v1278 = vrot.slane %v978, 4
        %v1279 = vor.u32 %v1278, %v1276
        %v1280 = vrot.slane %v1279, 4
        %v1281 = vrot.slane %v986, 4
        %v1282 = vrot.slane %v989, 5
        %v1283 = vor.u32 %v1281, %v1282
        %v1284 = vrot.slane %v1283, 4
        %v1285 = vrot.slane %v997, 5
        %v1286 = vsel %vm1199, %v1284, %v1285
        %v1287 = vrot.slane %v994, 4
        %v1288 = vor.u32 %v1287, %v1285
        %v1289 = vrot.slane %v1288, 4
        %v1290 = vrot.slane %v1002, 4
        %v1291 = vrot.slane %v1005, 5
        %v1292 = vor.u32 %v1290, %v1291
        %v1293 = vrot.slane %v1292, 4
        %v1294 = vrot.slane %v1013, 5
        %v1295 = vsel %vm1199, %v1293, %v1294
        %v1296 = vrot.slane %v1010, 4
        %v1297 = vor.u32 %v1296, %v1294
        %v1298 = vrot.slane %v1297, 4
        %v1299 = vrot.slane %v1018, 4
        %v1300 = vrot.slane %v1021, 5
        %v1301 = vor.u32 %v1299, %v1300
        %v1302 = vrot.slane %v1301, 4
        %v1303 = vrot.slane %v1029, 5
        %v1304 = vsel %vm1199, %v1302, %v1303
        %v1305 = vrot.slane %v1026, 4
        %v1306 = vor.u32 %v1305, %v1303
        %v1307 = vrot.slane %v1306, 4
        %v1308 = vrot.slane %v1034, 4
        %v1309 = vrot.slane %v1037, 5
        %v1310 = vor.u32 %v1308, %v1309
        %v1311 = vrot.slane %v1310, 4
        %v1312 = vrot.slane %v1045, 5
        %v1313 = vsel %vm1199, %v1311, %v1312
        %v1314 = vrot.slane %v1042, 4
        %v1315 = vor.u32 %v1314, %v1312
        %v1316 = vrot.slane %v1315, 4
        %v1317 = vrot.slane %v1050, 4
        %v1318 = vrot.slane %v1053, 5
        %v1319 = vor.u32 %v1317, %v1318
        %v1320 = vrot.slane %v1319, 4
        %v1321 = vrot.slane %v1061, 5
        %v1322 = vsel %vm1199, %v1320, %v1321
        %v1323 = vrot.slane %v1058, 4
        %v1324 = vor.u32 %v1323, %v1321
        %v1325 = vrot.slane %v1324, 4
        %v1326 = vrot.slane %v1066, 4
        %v1327 = vrot.slane %v1069, 5
        %v1328 = vor.u32 %v1326, %v1327
        %v1329 = vrot.slane %v1328, 4
        %v1330 = vrot.slane %v1077, 5
        %v1331 = vsel %vm1199, %v1329, %v1330
        %v1332 = vrot.slane %v1074, 4
        %v1333 = vor.u32 %v1332, %v1330
        %v1334 = vrot.slane %v1333, 4
        %v1335 = vrot.slane %v1082, 4
        %v1336 = vrot.slane %v1085, 5
        %v1337 = vor.u32 %v1335, %v1336
        %v1338 = vrot.slane %v1337, 4
        %v1339 = vrot.slane %v1093, 5
        %v1340 = vsel %vm1199, %v1338, %v1339
        %v1341 = vrot.slane %v1090, 4
        %v1342 = vor.u32 %v1341, %v1339
        %v1343 = vrot.slane %v1342, 4
        %1344 = vrot.lane.b32.xlu0 %v1205, 64
        %v1345 = vpop.permute.xlu0 %1344
        %1346 = vrot.lane.b32.xlu0 %v1208, 64
        %v1347 = vpop.permute.xlu0 %1346
        %1348 = vrot.lane.b32.xlu0 %v1214, 64
        %v1349 = vpop.permute.xlu0 %1348
        %1350 = vrot.lane.b32.xlu0 %v1217, 64
        %v1351 = vpop.permute.xlu0 %1350
        %1352 = vrot.lane.b32.xlu0 %v1223, 64
        %v1353 = vpop.permute.xlu0 %1352
        %1354 = vrot.lane.b32.xlu0 %v1226, 64
        %v1355 = vpop.permute.xlu0 %1354
        %1356 = vrot.lane.b32.xlu0 %v1232, 64
        %v1357 = vpop.permute.xlu0 %1356
        %1358 = vrot.lane.b32.xlu0 %v1235, 64
        %v1359 = vpop.permute.xlu0 %1358
        %1360 = vrot.lane.b32.xlu0 %v1241, 64
        %v1361 = vpop.permute.xlu0 %1360
        %1362 = vrot.lane.b32.xlu0 %v1244, 64
        %v1363 = vpop.permute.xlu0 %1362
        %1364 = vrot.lane.b32.xlu0 %v1250, 64
        %v1365 = vpop.permute.xlu0 %1364
        %1366 = vrot.lane.b32.xlu0 %v1253, 64
        %v1367 = vpop.permute.xlu0 %1366
        %1368 = vrot.lane.b32.xlu0 %v1259, 64
        %v1369 = vpop.permute.xlu0 %1368
        %1370 = vrot.lane.b32.xlu0 %v1262, 64
        %v1371 = vpop.permute.xlu0 %1370
        %1372 = vrot.lane.b32.xlu0 %v1268, 64
        %v1373 = vpop.permute.xlu0 %1372
        %1374 = vrot.lane.b32.xlu0 %v1271, 64
        %v1375 = vpop.permute.xlu0 %1374
        %1376 = vrot.lane.b32.xlu0 %v1277, 64
        %v1377 = vpop.permute.xlu0 %1376
        %1378 = vrot.lane.b32.xlu0 %v1280, 64
        %v1379 = vpop.permute.xlu0 %1378
        %1380 = vrot.lane.b32.xlu0 %v1286, 64
        %v1381 = vpop.permute.xlu0 %1380
        %1382 = vrot.lane.b32.xlu0 %v1289, 64
        %v1383 = vpop.permute.xlu0 %1382
        %1384 = vrot.lane.b32.xlu0 %v1295, 64
        %v1385 = vpop.permute.xlu0 %1384
        %1386 = vrot.lane.b32.xlu0 %v1298, 64
        %v1387 = vpop.permute.xlu0 %1386
        %1388 = vrot.lane.b32.xlu0 %v1304, 64
        %v1389 = vpop.permute.xlu0 %1388
        %1390 = vrot.lane.b32.xlu0 %v1307, 64
        %v1391 = vpop.permute.xlu0 %1390
        %1392 = vrot.lane.b32.xlu0 %v1313, 64
        %v1393 = vpop.permute.xlu0 %1392
        %1394 = vrot.lane.b32.xlu0 %v1316, 64
        %v1395 = vpop.permute.xlu0 %1394
        %1396 = vrot.lane.b32.xlu0 %v1322, 64
        %v1397 = vpop.permute.xlu0 %1396
        %1398 = vrot.lane.b32.xlu0 %v1325, 64
        %v1399 = vpop.permute.xlu0 %1398
        %1400 = vrot.lane.b32.xlu0 %v1331, 64
        %v1401 = vpop.permute.xlu0 %1400
        %1402 = vrot.lane.b32.xlu0 %v1334, 64
        %v1403 = vpop.permute.xlu0 %1402
        %1404 = vrot.lane.b32.xlu0 %v1340, 64
        %v1405 = vpop.permute.xlu0 %1404
        %1406 = vrot.lane.b32.xlu0 %v1343, 64
        %v1407 = vpop.permute.xlu0 %1406
        %vm1440 = vcmask 781824
        %1441 = vst.msk [vmem:[%s306] sm:$0xf] %vm1440, %v1345
        %vm1442 = vcmask 781824
        %vm1443 = vmand %vm1442, %vm1197
        %v1444 = vld [vmem:[%s306 + $0x4] sm:$0xf]
        %v1445 = vsel %vm1443, %v1347, %v1444
        %1446 = vst [vmem:[%s306 + $0x4] sm:$0xf] %v1445
        %1447 = vst.msk [vmem:[%s306 + $0x8] sm:$0xf] %vm1440, %v1349
        %v1448 = vld [vmem:[%s306 + $0xc] sm:$0xf]
        %v1449 = vsel %vm1443, %v1351, %v1448
        %1450 = vst [vmem:[%s306 + $0xc] sm:$0xf] %v1449
        %1451 = vst.msk [vmem:[%s306 + $0x10] sm:$0xf] %vm1440, %v1353
        %v1452 = vld [vmem:[%s306 + $0x14] sm:$0xf]
        %v1453 = vsel %vm1443, %v1355, %v1452
        %1454 = vst [vmem:[%s306 + $0x14] sm:$0xf] %v1453
        %1455 = vst.msk [vmem:[%s306 + $0x18] sm:$0xf] %vm1440, %v1357
        %v1456 = vld [vmem:[%s306 + $0x1c] sm:$0xf]
        %v1457 = vsel %vm1443, %v1359, %v1456
        %1458 = vst [vmem:[%s306 + $0x1c] sm:$0xf] %v1457
        %1459 = vst.msk [vmem:[%s306 + $0x20] sm:$0xf] %vm1440, %v1361
        %v1460 = vld [vmem:[%s306 + $0x24] sm:$0xf]
        %v1461 = vsel %vm1443, %v1363, %v1460
        %1462 = vst [vmem:[%s306 + $0x24] sm:$0xf] %v1461
        %1463 = vst.msk [vmem:[%s306 + $0x28] sm:$0xf] %vm1440, %v1365
        %v1464 = vld [vmem:[%s306 + $0x2c] sm:$0xf]
        %v1465 = vsel %vm1443, %v1367, %v1464
        %1466 = vst [vmem:[%s306 + $0x2c] sm:$0xf] %v1465
        %1467 = vst.msk [vmem:[%s306 + $0x30] sm:$0xf] %vm1440, %v1369
        %v1468 = vld [vmem:[%s306 + $0x34] sm:$0xf]
        %v1469 = vsel %vm1443, %v1371, %v1468
        %1470 = vst [vmem:[%s306 + $0x34] sm:$0xf] %v1469
        %1471 = vst.msk [vmem:[%s306 + $0x38] sm:$0xf] %vm1440, %v1373
        %v1472 = vld [vmem:[%s306 + $0x3c] sm:$0xf]
        %v1473 = vsel %vm1443, %v1375, %v1472
        %1474 = vst [vmem:[%s306 + $0x3c] sm:$0xf] %v1473
        %1475 = vst.msk [vmem:[%s306 + $0x40] sm:$0xf] %vm1440, %v1377
        %v1476 = vld [vmem:[%s306 + $0x44] sm:$0xf]
        %v1477 = vsel %vm1443, %v1379, %v1476
        %1478 = vst [vmem:[%s306 + $0x44] sm:$0xf] %v1477
        %1479 = vst.msk [vmem:[%s306 + $0x48] sm:$0xf] %vm1440, %v1381
        %v1480 = vld [vmem:[%s306 + $0x4c] sm:$0xf]
        %v1481 = vsel %vm1443, %v1383, %v1480
        %1482 = vst [vmem:[%s306 + $0x4c] sm:$0xf] %v1481
        %1483 = vst.msk [vmem:[%s306 + $0x50] sm:$0xf] %vm1440, %v1385
        %v1484 = vld [vmem:[%s306 + $0x54] sm:$0xf]
        %v1485 = vsel %vm1443, %v1387, %v1484
        %1486 = vst [vmem:[%s306 + $0x54] sm:$0xf] %v1485
        %1487 = vst.msk [vmem:[%s306 + $0x58] sm:$0xf] %vm1440, %v1389
        %v1488 = vld [vmem:[%s306 + $0x5c] sm:$0xf]
        %v1489 = vsel %vm1443, %v1391, %v1488
        %1490 = vst [vmem:[%s306 + $0x5c] sm:$0xf] %v1489
        %1491 = vst.msk [vmem:[%s306 + $0x60] sm:$0xf] %vm1440, %v1393
        %v1492 = vld [vmem:[%s306 + $0x64] sm:$0xf]
        %v1493 = vsel %vm1443, %v1395, %v1492
        %1494 = vst [vmem:[%s306 + $0x64] sm:$0xf] %v1493
        %1495 = vst.msk [vmem:[%s306 + $0x68] sm:$0xf] %vm1440, %v1397
        %v1496 = vld [vmem:[%s306 + $0x6c] sm:$0xf]
        %v1497 = vsel %vm1443, %v1399, %v1496
        %1498 = vst [vmem:[%s306 + $0x6c] sm:$0xf] %v1497
        %1499 = vst.msk [vmem:[%s306 + $0x70] sm:$0xf] %vm1440, %v1401
        %v1500 = vld [vmem:[%s306 + $0x74] sm:$0xf]
        %v1501 = vsel %vm1443, %v1403, %v1500
        %1502 = vst [vmem:[%s306 + $0x74] sm:$0xf] %v1501
        %1503 = vst.msk [vmem:[%s306 + $0x78] sm:$0xf] %vm1440, %v1405
        %v1504 = vld [vmem:[%s306 + $0x7c] sm:$0xf]
        %v1505 = vsel %vm1443, %v1407, %v1504
        %1506 = vst [vmem:[%s306 + $0x7c] sm:$0xf] %v1505
        %v1507 = vld [vmem:[#allocation2] sm:$0xf]
        %v1508 = vld [vmem:[#allocation2 + $0x4] sm:$0xf]
        %v1509 = vld [vmem:[#allocation2 + $0x8] sm:$0xf]
        %v1510 = vld [vmem:[#allocation2 + $0xc] sm:$0xf]
        %v1511 = vld [vmem:[#allocation2 + $0x10] sm:$0xf]
        %v1512 = vld [vmem:[#allocation2 + $0x14] sm:$0xf]
        %v1513 = vld [vmem:[#allocation2 + $0x18] sm:$0xf]
        %v1514 = vld [vmem:[#allocation2 + $0x1c] sm:$0xf]
        %v1515 = vld [vmem:[#allocation2 + $0x20] sm:$0xf]
        %v1516 = vld [vmem:[#allocation2 + $0x24] sm:$0xf]
        %v1517 = vld [vmem:[#allocation2 + $0x28] sm:$0xf]
        %v1518 = vld [vmem:[#allocation2 + $0x2c] sm:$0xf]
        %v1519 = vld [vmem:[#allocation2 + $0x30] sm:$0xf]
        %v1520 = vld [vmem:[#allocation2 + $0x34] sm:$0xf]
        %v1521 = vld [vmem:[#allocation2 + $0x38] sm:$0xf]
        %v1522 = vld [vmem:[#allocation2 + $0x3c] sm:$0xf]
        %v1523 = vld [vmem:[#allocation2 + $0x40] sm:$0xf]
        %v1524 = vld [vmem:[#allocation2 + $0x44] sm:$0xf]
        %v1525 = vld [vmem:[#allocation2 + $0x48] sm:$0xf]
        %v1526 = vld [vmem:[#allocation2 + $0x4c] sm:$0xf]
        %v1527 = vld [vmem:[#allocation2 + $0x50] sm:$0xf]
        %v1528 = vld [vmem:[#allocation2 + $0x54] sm:$0xf]
        %v1529 = vld [vmem:[#allocation2 + $0x58] sm:$0xf]
        %v1530 = vld [vmem:[#allocation2 + $0x5c] sm:$0xf]
        %v1531 = vld [vmem:[#allocation2 + $0x60] sm:$0xf]
        %v1532 = vld [vmem:[#allocation2 + $0x64] sm:$0xf]
        %v1533 = vld [vmem:[#allocation2 + $0x68] sm:$0xf]
        %v1534 = vld [vmem:[#allocation2 + $0x6c] sm:$0xf]
        %v1535 = vld [vmem:[#allocation2 + $0x70] sm:$0xf]
        %v1536 = vld [vmem:[#allocation2 + $0x74] sm:$0xf]
        %v1537 = vld [vmem:[#allocation2 + $0x78] sm:$0xf]
        %v1538 = vld [vmem:[#allocation2 + $0x7c] sm:$0xf]
        %v1539 = vld [vmem:[%s3] sm:$0xf]
        %v1540 = vld [vmem:[%s3 + $0x4] sm:$0xf]
        %v1541 = vld [vmem:[%s3 + $0x8] sm:$0xf]
        %v1542 = vld [vmem:[%s3 + $0xc] sm:$0xf]
        %v1543 = vld [vmem:[%s3 + $0x10] sm:$0xf]
        %v1544 = vld [vmem:[%s3 + $0x14] sm:$0xf]
        %v1545 = vld [vmem:[%s3 + $0x18] sm:$0xf]
        %v1546 = vld [vmem:[%s3 + $0x1c] sm:$0xf]
        %v1547 = vld [vmem:[%s3 + $0x20] sm:$0xf]
        %v1548 = vld [vmem:[%s3 + $0x24] sm:$0xf]
        %v1549 = vld [vmem:[%s3 + $0x28] sm:$0xf]
        %v1550 = vld [vmem:[%s3 + $0x2c] sm:$0xf]
        %v1551 = vld [vmem:[%s306] sm:$0xf]
        %v1552 = vld [vmem:[%s306 + $0x4] sm:$0xf]
        %v1553 = vld [vmem:[%s306 + $0x8] sm:$0xf]
        %v1554 = vld [vmem:[%s306 + $0xc] sm:$0xf]
        %v1555 = vld [vmem:[%s306 + $0x10] sm:$0xf]
        %v1556 = vld [vmem:[%s306 + $0x14] sm:$0xf]
        %v1557 = vld [vmem:[%s306 + $0x18] sm:$0xf]
        %v1558 = vld [vmem:[%s306 + $0x1c] sm:$0xf]
        %v1559 = vld [vmem:[%s306 + $0x20] sm:$0xf]
        %v1560 = vld [vmem:[%s306 + $0x24] sm:$0xf]
        %v1561 = vld [vmem:[%s306 + $0x28] sm:$0xf]
        %v1562 = vld [vmem:[%s306 + $0x2c] sm:$0xf]
        %v1563 = vld [vmem:[%s306 + $0x30] sm:$0xf]
        %v1564 = vld [vmem:[%s306 + $0x34] sm:$0xf]
        %v1565 = vld [vmem:[%s306 + $0x38] sm:$0xf]
        %v1566 = vld [vmem:[%s306 + $0x3c] sm:$0xf]
        %v1567 = vld [vmem:[%s306 + $0x40] sm:$0xf]
        %v1568 = vld [vmem:[%s306 + $0x44] sm:$0xf]
        %v1569 = vld [vmem:[%s306 + $0x48] sm:$0xf]
        %v1570 = vld [vmem:[%s306 + $0x4c] sm:$0xf]
        %v1571 = vld [vmem:[%s306 + $0x50] sm:$0xf]
        %v1572 = vld [vmem:[%s306 + $0x54] sm:$0xf]
        %v1573 = vld [vmem:[%s306 + $0x58] sm:$0xf]
        %v1574 = vld [vmem:[%s306 + $0x5c] sm:$0xf]
        %v1575 = vld [vmem:[%s306 + $0x60] sm:$0xf]
        %v1576 = vld [vmem:[%s306 + $0x64] sm:$0xf]
        %v1577 = vld [vmem:[%s306 + $0x68] sm:$0xf]
        %v1578 = vld [vmem:[%s306 + $0x6c] sm:$0xf]
        %v1579 = vld [vmem:[%s306 + $0x70] sm:$0xf]
        %v1580 = vld [vmem:[%s306 + $0x74] sm:$0xf]
        %v1581 = vld [vmem:[%s306 + $0x78] sm:$0xf]
        %v1582 = vld [vmem:[%s306 + $0x7c] sm:$0xf]
        %s1583 = scalar_lea.vmem %s3, 48
        %v1584 = vld [vmem:[%s1583] sm:$0xf]
        %v1585 = vld [vmem:[%s1583 + $0x4] sm:$0xf]
        %v1586 = vld [vmem:[%s1583 + $0x8] sm:$0xf]
        %v1587 = vld [vmem:[%s1583 + $0xc] sm:$0xf]
        %v1588 = vld [vmem:[%s1583 + $0x10] sm:$0xf]
        %v1589 = vld [vmem:[%s1583 + $0x14] sm:$0xf]
        %v1590 = vld [vmem:[%s1583 + $0x18] sm:$0xf]
        %v1591 = vld [vmem:[%s1583 + $0x1c] sm:$0xf]
        %v1592 = vld [vmem:[%s1583 + $0x20] sm:$0xf]
        %v1593 = vld [vmem:[%s1583 + $0x24] sm:$0xf]
        %v1594 = vld [vmem:[%s1583 + $0x28] sm:$0xf]
        %v1595 = vld [vmem:[%s1583 + $0x2c] sm:$0xf]
        %v1628 = vunpack.c.l.b16 %v1551
        %v1629 = vunpack.c.l.b16 %v1552
        %v1630 = vunpack.c.l.b16 %v1553
        %v1631 = vunpack.c.l.b16 %v1554
        %v1632 = vunpack.c.l.b16 %v1555
        %v1633 = vunpack.c.l.b16 %v1556
        %v1634 = vunpack.c.l.b16 %v1557
        %v1635 = vunpack.c.l.b16 %v1558
        %v1636 = vunpack.c.l.b16 %v1559
        %v1637 = vunpack.c.l.b16 %v1560
        %v1638 = vunpack.c.l.b16 %v1561
        %v1639 = vunpack.c.l.b16 %v1562
        %v1640 = vunpack.c.l.b16 %v1563
        %v1641 = vunpack.c.l.b16 %v1564
        %v1642 = vunpack.c.l.b16 %v1565
        %v1643 = vunpack.c.l.b16 %v1566
        %v1644 = vunpack.c.l.b16 %v1567
        %v1645 = vunpack.c.l.b16 %v1568
        %v1646 = vunpack.c.l.b16 %v1569
        %v1647 = vunpack.c.l.b16 %v1570
        %v1648 = vunpack.c.l.b16 %v1571
        %v1649 = vunpack.c.l.b16 %v1572
        %v1650 = vunpack.c.l.b16 %v1573
        %v1651 = vunpack.c.l.b16 %v1574
        %v1652 = vunpack.c.l.b16 %v1575
        %v1653 = vunpack.c.l.b16 %v1576
        %v1654 = vunpack.c.l.b16 %v1577
        %v1655 = vunpack.c.l.b16 %v1578
        %v1656 = vunpack.c.l.b16 %v1579
        %v1657 = vunpack.c.l.b16 %v1580
        %v1658 = vunpack.c.l.b16 %v1581
        %v1659 = vunpack.c.l.b16 %v1582
        %v1660 = vpack.c.b16 %v1629, %v1628
        %v1661 = vpack.c.b16 %v1631, %v1630
        %v1662 = vpack.c.b16 %v1633, %v1632
        %v1663 = vpack.c.b16 %v1635, %v1634
        %v1664 = vpack.c.b16 %v1637, %v1636
        %v1665 = vpack.c.b16 %v1639, %v1638
        %v1666 = vpack.c.b16 %v1641, %v1640
        %v1667 = vpack.c.b16 %v1643, %v1642
        %v1668 = vpack.c.b16 %v1645, %v1644
        %v1669 = vpack.c.b16 %v1647, %v1646
        %v1670 = vpack.c.b16 %v1649, %v1648
        %v1671 = vpack.c.b16 %v1651, %v1650
        %v1672 = vpack.c.b16 %v1653, %v1652
        %v1673 = vpack.c.b16 %v1655, %v1654
        %v1674 = vpack.c.b16 %v1657, %v1656
        %v1675 = vpack.c.b16 %v1659, %v1658
        %v1688 = vunpack.c.l.b16 %v1584
        %v1689 = vunpack.c.l.b16 %v1585
        %v1690 = vunpack.c.l.b16 %v1586
        %v1691 = vunpack.c.l.b16 %v1587
        %v1692 = vunpack.c.l.b16 %v1588
        %v1693 = vunpack.c.l.b16 %v1589
        %v1694 = vunpack.c.l.b16 %v1590
        %v1695 = vunpack.c.l.b16 %v1591
        %v1696 = vunpack.c.l.b16 %v1592
        %v1697 = vunpack.c.l.b16 %v1593
        %v1698 = vunpack.c.l.b16 %v1594
        %v1699 = vunpack.c.l.b16 %v1595
        %v1700 = vpack.c.b16 %v1689, %v1688
        %v1701 = vpack.c.b16 %v1691, %v1690
        %v1702 = vpack.c.b16 %v1693, %v1692
        %v1703 = vpack.c.b16 %v1695, %v1694
        %v1704 = vpack.c.b16 %v1697, %v1696
        %v1705 = vpack.c.b16 %v1699, %v1698
        %vm1712 = vcmask 785408
        %v1714 = vsel %vm1712, %v1660, 0
        %v1717 = vsel %vm1712, %v1661, 0
        %v1720 = vsel %vm1712, %v1662, 0
        %v1723 = vsel %vm1712, %v1663, 0
        %v1726 = vsel %vm1712, %v1664, 0
        %v1729 = vsel %vm1712, %v1665, 0
        %v1732 = vsel %vm1712, %v1666, 0
        %v1735 = vsel %vm1712, %v1667, 0
        %v1738 = vsel %vm1712, %v1668, 0
        %v1741 = vsel %vm1712, %v1669, 0
        %v1744 = vsel %vm1712, %v1670, 0
        %v1747 = vsel %vm1712, %v1671, 0
        %v1750 = vsel %vm1712, %v1672, 0
        %v1753 = vsel %vm1712, %v1673, 0
        %v1756 = vsel %vm1712, %v1674, 0
        %v1759 = vsel %vm1712, %v1675, 0
        %1761 = vmatpush.bf16.msra.mxu0 0
        %1762 = vmatpush.bf16.msra.mxu0 0
        %1763 = vmatpush.bf16.msra.mxu0 %v1705
        %1764 = vmatpush.bf16.msra.mxu0 %v1704
        %1765 = vmatpush.bf16.msra.mxu0 %v1703
        %1766 = vmatpush.bf16.msra.mxu0 %v1702
        %1767 = vmatpush.bf16.msra.mxu0 %v1701
        %1768 = vmatpush.bf16.msra.mxu0 %v1700
        %1769 = vmatmul.bf16.gmra.mxu0 %v1714
        %v1770 = vpop.f32.mrf.mxu0
        %v1771 = vadd.f32 0.0, %v1770
        %v1772 = vpop.f32.mrf.mxu0
        %v1773 = vadd.f32 0.0, %v1772
        %1774 = vmatmul.bf16.gmra.mxu0 %v1717
        %v1775 = vpop.f32.mrf.mxu0
        %v1776 = vadd.f32 0.0, %v1775
        %v1777 = vpop.f32.mrf.mxu0
        %v1778 = vadd.f32 0.0, %v1777
        %1779 = vmatmul.bf16.gmra.mxu0 %v1720
        %v1780 = vpop.f32.mrf.mxu0
        %v1781 = vadd.f32 0.0, %v1780
        %v1782 = vpop.f32.mrf.mxu0
        %v1783 = vadd.f32 0.0, %v1782
        %1784 = vmatmul.bf16.gmra.mxu0 %v1723
        %v1785 = vpop.f32.mrf.mxu0
        %v1786 = vadd.f32 0.0, %v1785
        %v1787 = vpop.f32.mrf.mxu0
        %v1788 = vadd.f32 0.0, %v1787
        %1789 = vmatmul.bf16.gmra.mxu0 %v1726
        %v1790 = vpop.f32.mrf.mxu0
        %v1791 = vadd.f32 0.0, %v1790
        %v1792 = vpop.f32.mrf.mxu0
        %v1793 = vadd.f32 0.0, %v1792
        %1794 = vmatmul.bf16.gmra.mxu0 %v1729
        %v1795 = vpop.f32.mrf.mxu0
        %v1796 = vadd.f32 0.0, %v1795
        %v1797 = vpop.f32.mrf.mxu0
        %v1798 = vadd.f32 0.0, %v1797
        %1799 = vmatmul.bf16.gmra.mxu0 %v1732
        %v1800 = vpop.f32.mrf.mxu0
        %v1801 = vadd.f32 0.0, %v1800
        %v1802 = vpop.f32.mrf.mxu0
        %v1803 = vadd.f32 0.0, %v1802
        %1804 = vmatmul.bf16.gmra.mxu0 %v1735
        %v1805 = vpop.f32.mrf.mxu0
        %v1806 = vadd.f32 0.0, %v1805
        %v1807 = vpop.f32.mrf.mxu0
        %v1808 = vadd.f32 0.0, %v1807
        %1809 = vmatmul.bf16.gmra.mxu0 %v1738
        %v1810 = vpop.f32.mrf.mxu0
        %v1811 = vadd.f32 0.0, %v1810
        %v1812 = vpop.f32.mrf.mxu0
        %v1813 = vadd.f32 0.0, %v1812
        %1814 = vmatmul.bf16.gmra.mxu0 %v1741
        %v1815 = vpop.f32.mrf.mxu0
        %v1816 = vadd.f32 0.0, %v1815
        %v1817 = vpop.f32.mrf.mxu0
        %v1818 = vadd.f32 0.0, %v1817
        %1819 = vmatmul.bf16.gmra.mxu0 %v1744
        %v1820 = vpop.f32.mrf.mxu0
        %v1821 = vadd.f32 0.0, %v1820
        %v1822 = vpop.f32.mrf.mxu0
        %v1823 = vadd.f32 0.0, %v1822
        %1824 = vmatmul.bf16.gmra.mxu0 %v1747
        %v1825 = vpop.f32.mrf.mxu0
        %v1826 = vadd.f32 0.0, %v1825
        %v1827 = vpop.f32.mrf.mxu0
        %v1828 = vadd.f32 0.0, %v1827
        %1829 = vmatmul.bf16.gmra.mxu0 %v1750
        %v1830 = vpop.f32.mrf.mxu0
        %v1831 = vadd.f32 0.0, %v1830
        %v1832 = vpop.f32.mrf.mxu0
        %v1833 = vadd.f32 0.0, %v1832
        %1834 = vmatmul.bf16.gmra.mxu0 %v1753
        %v1835 = vpop.f32.mrf.mxu0
        %v1836 = vadd.f32 0.0, %v1835
        %v1837 = vpop.f32.mrf.mxu0
        %v1838 = vadd.f32 0.0, %v1837
        %1839 = vmatmul.bf16.gmra.mxu0 %v1756
        %v1840 = vpop.f32.mrf.mxu0
        %v1841 = vadd.f32 0.0, %v1840
        %v1842 = vpop.f32.mrf.mxu0
        %v1843 = vadd.f32 0.0, %v1842
        %1844 = vmatmul.bf16.gmra.mxu0 %v1759
        %v1845 = vpop.f32.mrf.mxu0
        %v1846 = vadd.f32 0.0, %v1845
        %v1847 = vpop.f32.mrf.mxu0
        %v1848 = vadd.f32 0.0, %v1847
        %1849 = vdwg.mxu0
        %v1882 = vunpack.c.l.b16 %v1507
        %v1883 = vunpack.c.l.b16 %v1508
        %v1884 = vunpack.c.l.b16 %v1509
        %v1885 = vunpack.c.l.b16 %v1510
        %v1886 = vunpack.c.l.b16 %v1511
        %v1887 = vunpack.c.l.b16 %v1512
        %v1888 = vunpack.c.l.b16 %v1513
        %v1889 = vunpack.c.l.b16 %v1514
        %v1890 = vunpack.c.l.b16 %v1515
        %v1891 = vunpack.c.l.b16 %v1516
        %v1892 = vunpack.c.l.b16 %v1517
        %v1893 = vunpack.c.l.b16 %v1518
        %v1894 = vunpack.c.l.b16 %v1519
        %v1895 = vunpack.c.l.b16 %v1520
        %v1896 = vunpack.c.l.b16 %v1521
        %v1897 = vunpack.c.l.b16 %v1522
        %v1898 = vunpack.c.l.b16 %v1523
        %v1899 = vunpack.c.l.b16 %v1524
        %v1900 = vunpack.c.l.b16 %v1525
        %v1901 = vunpack.c.l.b16 %v1526
        %v1902 = vunpack.c.l.b16 %v1527
        %v1903 = vunpack.c.l.b16 %v1528
        %v1904 = vunpack.c.l.b16 %v1529
        %v1905 = vunpack.c.l.b16 %v1530
        %v1906 = vunpack.c.l.b16 %v1531
        %v1907 = vunpack.c.l.b16 %v1532
        %v1908 = vunpack.c.l.b16 %v1533
        %v1909 = vunpack.c.l.b16 %v1534
        %v1910 = vunpack.c.l.b16 %v1535
        %v1911 = vunpack.c.l.b16 %v1536
        %v1912 = vunpack.c.l.b16 %v1537
        %v1913 = vunpack.c.l.b16 %v1538
        %v1914 = vpack.c.b16 %v1883, %v1882
        %v1915 = vpack.c.b16 %v1885, %v1884
        %v1916 = vpack.c.b16 %v1887, %v1886
        %v1917 = vpack.c.b16 %v1889, %v1888
        %v1918 = vpack.c.b16 %v1891, %v1890
        %v1919 = vpack.c.b16 %v1893, %v1892
        %v1920 = vpack.c.b16 %v1895, %v1894
        %v1921 = vpack.c.b16 %v1897, %v1896
        %v1922 = vpack.c.b16 %v1899, %v1898
        %v1923 = vpack.c.b16 %v1901, %v1900
        %v1924 = vpack.c.b16 %v1903, %v1902
        %v1925 = vpack.c.b16 %v1905, %v1904
        %v1926 = vpack.c.b16 %v1907, %v1906
        %v1927 = vpack.c.b16 %v1909, %v1908
        %v1928 = vpack.c.b16 %v1911, %v1910
        %v1929 = vpack.c.b16 %v1913, %v1912
        %v1942 = vunpack.c.l.b16 %v1539
        %v1943 = vunpack.c.l.b16 %v1540
        %v1944 = vunpack.c.l.b16 %v1541
        %v1945 = vunpack.c.l.b16 %v1542
        %v1946 = vunpack.c.l.b16 %v1543
        %v1947 = vunpack.c.l.b16 %v1544
        %v1948 = vunpack.c.l.b16 %v1545
        %v1949 = vunpack.c.l.b16 %v1546
        %v1950 = vunpack.c.l.b16 %v1547
        %v1951 = vunpack.c.l.b16 %v1548
        %v1952 = vunpack.c.l.b16 %v1549
        %v1953 = vunpack.c.l.b16 %v1550
        %v1954 = vpack.c.b16 %v1943, %v1942
        %v1955 = vpack.c.b16 %v1945, %v1944
        %v1956 = vpack.c.b16 %v1947, %v1946
        %v1957 = vpack.c.b16 %v1949, %v1948
        %v1958 = vpack.c.b16 %v1951, %v1950
        %v1959 = vpack.c.b16 %v1953, %v1952
        %v1967 = vsel %vm1712, %v1914, 0
        %v1970 = vsel %vm1712, %v1915, 0
        %v1973 = vsel %vm1712, %v1916, 0
        %v1976 = vsel %vm1712, %v1917, 0
        %v1979 = vsel %vm1712, %v1918, 0
        %v1982 = vsel %vm1712, %v1919, 0
        %v1985 = vsel %vm1712, %v1920, 0
        %v1988 = vsel %vm1712, %v1921, 0
        %v1991 = vsel %vm1712, %v1922, 0
        %v1994 = vsel %vm1712, %v1923, 0
        %v1997 = vsel %vm1712, %v1924, 0
        %v2000 = vsel %vm1712, %v1925, 0
        %v2003 = vsel %vm1712, %v1926, 0
        %v2006 = vsel %vm1712, %v1927, 0
        %v2009 = vsel %vm1712, %v1928, 0
        %v2012 = vsel %vm1712, %v1929, 0
        %2014 = vmatpush.bf16.msra.mxu0 0
        %2015 = vmatpush.bf16.msra.mxu0 0
        %2016 = vmatpush.bf16.msra.mxu0 %v1959
        %2017 = vmatpush.bf16.msra.mxu0 %v1958
        %2018 = vmatpush.bf16.msra.mxu0 %v1957
        %2019 = vmatpush.bf16.msra.mxu0 %v1956
        %2020 = vmatpush.bf16.msra.mxu0 %v1955
        %2021 = vmatpush.bf16.msra.mxu0 %v1954
        %2022 = vmatmul.bf16.gmra.mxu0 %v1967
        %v2023 = vpop.f32.mrf.mxu0
        %v2024 = vadd.f32 %v1771, %v2023
        %v2025 = vpop.f32.mrf.mxu0
        %v2026 = vadd.f32 %v1773, %v2025
        %2027 = vmatmul.bf16.gmra.mxu0 %v1970
        %v2028 = vpop.f32.mrf.mxu0
        %v2029 = vadd.f32 %v1776, %v2028
        %v2030 = vpop.f32.mrf.mxu0
        %v2031 = vadd.f32 %v1778, %v2030
        %2032 = vmatmul.bf16.gmra.mxu0 %v1973
        %v2033 = vpop.f32.mrf.mxu0
        %v2034 = vadd.f32 %v1781, %v2033
        %v2035 = vpop.f32.mrf.mxu0
        %v2036 = vadd.f32 %v1783, %v2035
        %2037 = vmatmul.bf16.gmra.mxu0 %v1976
        %v2038 = vpop.f32.mrf.mxu0
        %v2039 = vadd.f32 %v1786, %v2038
        %v2040 = vpop.f32.mrf.mxu0
        %v2041 = vadd.f32 %v1788, %v2040
        %2042 = vmatmul.bf16.gmra.mxu0 %v1979
        %v2043 = vpop.f32.mrf.mxu0
        %v2044 = vadd.f32 %v1791, %v2043
        %v2045 = vpop.f32.mrf.mxu0
        %v2046 = vadd.f32 %v1793, %v2045
        %2047 = vmatmul.bf16.gmra.mxu0 %v1982
        %v2048 = vpop.f32.mrf.mxu0
        %v2049 = vadd.f32 %v1796, %v2048
        %v2050 = vpop.f32.mrf.mxu0
        %v2051 = vadd.f32 %v1798, %v2050
        %2052 = vmatmul.bf16.gmra.mxu0 %v1985
        %v2053 = vpop.f32.mrf.mxu0
        %v2054 = vadd.f32 %v1801, %v2053
        %v2055 = vpop.f32.mrf.mxu0
        %v2056 = vadd.f32 %v1803, %v2055
        %2057 = vmatmul.bf16.gmra.mxu0 %v1988
        %v2058 = vpop.f32.mrf.mxu0
        %v2059 = vadd.f32 %v1806, %v2058
        %v2060 = vpop.f32.mrf.mxu0
        %v2061 = vadd.f32 %v1808, %v2060
        %2062 = vmatmul.bf16.gmra.mxu0 %v1991
        %v2063 = vpop.f32.mrf.mxu0
        %v2064 = vadd.f32 %v1811, %v2063
        %v2065 = vpop.f32.mrf.mxu0
        %v2066 = vadd.f32 %v1813, %v2065
        %2067 = vmatmul.bf16.gmra.mxu0 %v1994
        %v2068 = vpop.f32.mrf.mxu0
        %v2069 = vadd.f32 %v1816, %v2068
        %v2070 = vpop.f32.mrf.mxu0
        %v2071 = vadd.f32 %v1818, %v2070
        %2072 = vmatmul.bf16.gmra.mxu0 %v1997
        %v2073 = vpop.f32.mrf.mxu0
        %v2074 = vadd.f32 %v1821, %v2073
        %v2075 = vpop.f32.mrf.mxu0
        %v2076 = vadd.f32 %v1823, %v2075
        %2077 = vmatmul.bf16.gmra.mxu0 %v2000
        %v2078 = vpop.f32.mrf.mxu0
        %v2079 = vadd.f32 %v1826, %v2078
        %v2080 = vpop.f32.mrf.mxu0
        %v2081 = vadd.f32 %v1828, %v2080
        %2082 = vmatmul.bf16.gmra.mxu0 %v2003
        %v2083 = vpop.f32.mrf.mxu0
        %v2084 = vadd.f32 %v1831, %v2083
        %v2085 = vpop.f32.mrf.mxu0
        %v2086 = vadd.f32 %v1833, %v2085
        %2087 = vmatmul.bf16.gmra.mxu0 %v2006
        %v2088 = vpop.f32.mrf.mxu0
        %v2089 = vadd.f32 %v1836, %v2088
        %v2090 = vpop.f32.mrf.mxu0
        %v2091 = vadd.f32 %v1838, %v2090
        %2092 = vmatmul.bf16.gmra.mxu0 %v2009
        %v2093 = vpop.f32.mrf.mxu0
        %v2094 = vadd.f32 %v1841, %v2093
        %v2095 = vpop.f32.mrf.mxu0
        %v2096 = vadd.f32 %v1843, %v2095
        %2097 = vmatmul.bf16.gmra.mxu0 %v2012
        %v2098 = vpop.f32.mrf.mxu0
        %v2099 = vadd.f32 %v1846, %v2098
        %v2100 = vpop.f32.mrf.mxu0
        %v2101 = vadd.f32 %v1848, %v2100
        %2102 = vdwg.mxu0
        %s2103 = scalar_lea.vmem [#allocation2], 16
        %v2104 = vld [vmem:[%s2103] sm:$0xf]
        %v2105 = vld [vmem:[%s2103 + $0x4] sm:$0xf]
        %v2106 = vld [vmem:[%s2103 + $0x8] sm:$0xf]
        %v2107 = vld [vmem:[%s2103 + $0xc] sm:$0xf]
        %v2108 = vld [vmem:[%s2103 + $0x10] sm:$0xf]
        %v2109 = vld [vmem:[%s2103 + $0x14] sm:$0xf]
        %v2110 = vld [vmem:[%s2103 + $0x18] sm:$0xf]
        %v2111 = vld [vmem:[%s2103 + $0x1c] sm:$0xf]
        %v2112 = vld [vmem:[%s2103 + $0x20] sm:$0xf]
        %v2113 = vld [vmem:[%s2103 + $0x24] sm:$0xf]
        %v2114 = vld [vmem:[%s2103 + $0x28] sm:$0xf]
        %v2115 = vld [vmem:[%s2103 + $0x2c] sm:$0xf]
        %v2116 = vld [vmem:[%s2103 + $0x30] sm:$0xf]
        %v2117 = vld [vmem:[%s2103 + $0x34] sm:$0xf]
        %v2118 = vld [vmem:[%s2103 + $0x38] sm:$0xf]
        %v2119 = vld [vmem:[%s2103 + $0x3c] sm:$0xf]
        %v2120 = vld [vmem:[%s2103 + $0x40] sm:$0xf]
        %v2121 = vld [vmem:[%s2103 + $0x44] sm:$0xf]
        %v2122 = vld [vmem:[%s2103 + $0x48] sm:$0xf]
        %v2123 = vld [vmem:[%s2103 + $0x4c] sm:$0xf]
        %v2124 = vld [vmem:[%s2103 + $0x50] sm:$0xf]
        %v2125 = vld [vmem:[%s2103 + $0x54] sm:$0xf]
        %v2126 = vld [vmem:[%s2103 + $0x58] sm:$0xf]
        %v2127 = vld [vmem:[%s2103 + $0x5c] sm:$0xf]
        %v2128 = vld [vmem:[%s2103 + $0x60] sm:$0xf]
        %v2129 = vld [vmem:[%s2103 + $0x64] sm:$0xf]
        %v2130 = vld [vmem:[%s2103 + $0x68] sm:$0xf]
        %v2131 = vld [vmem:[%s2103 + $0x6c] sm:$0xf]
        %v2132 = vld [vmem:[%s2103 + $0x70] sm:$0xf]
        %v2133 = vld [vmem:[%s2103 + $0x74] sm:$0xf]
        %v2134 = vld [vmem:[%s2103 + $0x78] sm:$0xf]
        %v2135 = vld [vmem:[%s2103 + $0x7c] sm:$0xf]
        %s2136 = scalar_lea.vmem %s3, 96
        %v2137 = vld [vmem:[%s2136] sm:$0xf]
        %v2138 = vld [vmem:[%s2136 + $0x4] sm:$0xf]
        %v2139 = vld [vmem:[%s2136 + $0x8] sm:$0xf]
        %v2140 = vld [vmem:[%s2136 + $0xc] sm:$0xf]
        %v2141 = vld [vmem:[%s2136 + $0x10] sm:$0xf]
        %v2142 = vld [vmem:[%s2136 + $0x14] sm:$0xf]
        %v2143 = vld [vmem:[%s2136 + $0x18] sm:$0xf]
        %v2144 = vld [vmem:[%s2136 + $0x1c] sm:$0xf]
        %v2145 = vld [vmem:[%s2136 + $0x20] sm:$0xf]
        %v2146 = vld [vmem:[%s2136 + $0x24] sm:$0xf]
        %v2147 = vld [vmem:[%s2136 + $0x28] sm:$0xf]
        %v2148 = vld [vmem:[%s2136 + $0x2c] sm:$0xf]
        %v2181 = vunpack.c.l.b16 %v2104
        %v2182 = vunpack.c.l.b16 %v2105
        %v2183 = vunpack.c.l.b16 %v2106
        %v2184 = vunpack.c.l.b16 %v2107
        %v2185 = vunpack.c.l.b16 %v2108
        %v2186 = vunpack.c.l.b16 %v2109
        %v2187 = vunpack.c.l.b16 %v2110
        %v2188 = vunpack.c.l.b16 %v2111
        %v2189 = vunpack.c.l.b16 %v2112
        %v2190 = vunpack.c.l.b16 %v2113
        %v2191 = vunpack.c.l.b16 %v2114
        %v2192 = vunpack.c.l.b16 %v2115
        %v2193 = vunpack.c.l.b16 %v2116
        %v2194 = vunpack.c.l.b16 %v2117
        %v2195 = vunpack.c.l.b16 %v2118
        %v2196 = vunpack.c.l.b16 %v2119
        %v2197 = vunpack.c.l.b16 %v2120
        %v2198 = vunpack.c.l.b16 %v2121
        %v2199 = vunpack.c.l.b16 %v2122
        %v2200 = vunpack.c.l.b16 %v2123
        %v2201 = vunpack.c.l.b16 %v2124
        %v2202 = vunpack.c.l.b16 %v2125
        %v2203 = vunpack.c.l.b16 %v2126
        %v2204 = vunpack.c.l.b16 %v2127
        %v2205 = vunpack.c.l.b16 %v2128
        %v2206 = vunpack.c.l.b16 %v2129
        %v2207 = vunpack.c.l.b16 %v2130
        %v2208 = vunpack.c.l.b16 %v2131
        %v2209 = vunpack.c.l.b16 %v2132
        %v2210 = vunpack.c.l.b16 %v2133
        %v2211 = vunpack.c.l.b16 %v2134
        %v2212 = vunpack.c.l.b16 %v2135
        %v2213 = vpack.c.b16 %v2182, %v2181
        %v2214 = vpack.c.b16 %v2184, %v2183
        %v2215 = vpack.c.b16 %v2186, %v2185
        %v2216 = vpack.c.b16 %v2188, %v2187
        %v2217 = vpack.c.b16 %v2190, %v2189
        %v2218 = vpack.c.b16 %v2192, %v2191
        %v2219 = vpack.c.b16 %v2194, %v2193
        %v2220 = vpack.c.b16 %v2196, %v2195
        %v2221 = vpack.c.b16 %v2198, %v2197
        %v2222 = vpack.c.b16 %v2200, %v2199
        %v2223 = vpack.c.b16 %v2202, %v2201
        %v2224 = vpack.c.b16 %v2204, %v2203
        %v2225 = vpack.c.b16 %v2206, %v2205
        %v2226 = vpack.c.b16 %v2208, %v2207
        %v2227 = vpack.c.b16 %v2210, %v2209
        %v2228 = vpack.c.b16 %v2212, %v2211
        %v2241 = vunpack.c.l.b16 %v2137
        %v2242 = vunpack.c.l.b16 %v2138
        %v2243 = vunpack.c.l.b16 %v2139
        %v2244 = vunpack.c.l.b16 %v2140
        %v2245 = vunpack.c.l.b16 %v2141
        %v2246 = vunpack.c.l.b16 %v2142
        %v2247 = vunpack.c.l.b16 %v2143
        %v2248 = vunpack.c.l.b16 %v2144
        %v2249 = vunpack.c.l.b16 %v2145
        %v2250 = vunpack.c.l.b16 %v2146
        %v2251 = vunpack.c.l.b16 %v2147
        %v2252 = vunpack.c.l.b16 %v2148
        %v2253 = vpack.c.b16 %v2242, %v2241
        %v2254 = vpack.c.b16 %v2244, %v2243
        %v2255 = vpack.c.b16 %v2246, %v2245
        %v2256 = vpack.c.b16 %v2248, %v2247
        %v2257 = vpack.c.b16 %v2250, %v2249
        %v2258 = vpack.c.b16 %v2252, %v2251
        %v2266 = vsel %vm1712, %v2213, 0
        %v2269 = vsel %vm1712, %v2214, 0
        %v2272 = vsel %vm1712, %v2215, 0
        %v2275 = vsel %vm1712, %v2216, 0
        %v2278 = vsel %vm1712, %v2217, 0
        %v2281 = vsel %vm1712, %v2218, 0
        %v2284 = vsel %vm1712, %v2219, 0
        %v2287 = vsel %vm1712, %v2220, 0
        %v2290 = vsel %vm1712, %v2221, 0
        %v2293 = vsel %vm1712, %v2222, 0
        %v2296 = vsel %vm1712, %v2223, 0
        %v2299 = vsel %vm1712, %v2224, 0
        %v2302 = vsel %vm1712, %v2225, 0
        %v2305 = vsel %vm1712, %v2226, 0
        %v2308 = vsel %vm1712, %v2227, 0
        %v2311 = vsel %vm1712, %v2228, 0
        %2313 = vmatpush.bf16.msra.mxu0 0
        %2314 = vmatpush.bf16.msra.mxu0 0
        %2315 = vmatpush.bf16.msra.mxu0 %v2258
        %2316 = vmatpush.bf16.msra.mxu0 %v2257
        %2317 = vmatpush.bf16.msra.mxu0 %v2256
        %2318 = vmatpush.bf16.msra.mxu0 %v2255
        %2319 = vmatpush.bf16.msra.mxu0 %v2254
        %2320 = vmatpush.bf16.msra.mxu0 %v2253
        %2321 = vmatmul.bf16.gmra.mxu0 %v2266
        %v2322 = vpop.f32.mrf.mxu0
        %v2323 = vadd.f32 0.0, %v2322
        %v2324 = vpop.f32.mrf.mxu0
        %v2325 = vadd.f32 0.0, %v2324
        %2326 = vmatmul.bf16.gmra.mxu0 %v2269
        %v2327 = vpop.f32.mrf.mxu0
        %v2328 = vadd.f32 0.0, %v2327
        %v2329 = vpop.f32.mrf.mxu0
        %v2330 = vadd.f32 0.0, %v2329
        %2331 = vmatmul.bf16.gmra.mxu0 %v2272
        %v2332 = vpop.f32.mrf.mxu0
        %v2333 = vadd.f32 0.0, %v2332
        %v2334 = vpop.f32.mrf.mxu0
        %v2335 = vadd.f32 0.0, %v2334
        %2336 = vmatmul.bf16.gmra.mxu0 %v2275
        %v2337 = vpop.f32.mrf.mxu0
        %v2338 = vadd.f32 0.0, %v2337
        %v2339 = vpop.f32.mrf.mxu0
        %v2340 = vadd.f32 0.0, %v2339
        %2341 = vmatmul.bf16.gmra.mxu0 %v2278
        %v2342 = vpop.f32.mrf.mxu0
        %v2343 = vadd.f32 0.0, %v2342
        %v2344 = vpop.f32.mrf.mxu0
        %v2345 = vadd.f32 0.0, %v2344
        %2346 = vmatmul.bf16.gmra.mxu0 %v2281
        %v2347 = vpop.f32.mrf.mxu0
        %v2348 = vadd.f32 0.0, %v2347
        %v2349 = vpop.f32.mrf.mxu0
        %v2350 = vadd.f32 0.0, %v2349
        %2351 = vmatmul.bf16.gmra.mxu0 %v2284
        %v2352 = vpop.f32.mrf.mxu0
        %v2353 = vadd.f32 0.0, %v2352
        %v2354 = vpop.f32.mrf.mxu0
        %v2355 = vadd.f32 0.0, %v2354
        %2356 = vmatmul.bf16.gmra.mxu0 %v2287
        %v2357 = vpop.f32.mrf.mxu0
        %v2358 = vadd.f32 0.0, %v2357
        %v2359 = vpop.f32.mrf.mxu0
        %v2360 = vadd.f32 0.0, %v2359
        %2361 = vmatmul.bf16.gmra.mxu0 %v2290
        %v2362 = vpop.f32.mrf.mxu0
        %v2363 = vadd.f32 0.0, %v2362
        %v2364 = vpop.f32.mrf.mxu0
        %v2365 = vadd.f32 0.0, %v2364
        %2366 = vmatmul.bf16.gmra.mxu0 %v2293
        %v2367 = vpop.f32.mrf.mxu0
        %v2368 = vadd.f32 0.0, %v2367
        %v2369 = vpop.f32.mrf.mxu0
        %v2370 = vadd.f32 0.0, %v2369
        %2371 = vmatmul.bf16.gmra.mxu0 %v2296
        %v2372 = vpop.f32.mrf.mxu0
        %v2373 = vadd.f32 0.0, %v2372
        %v2374 = vpop.f32.mrf.mxu0
        %v2375 = vadd.f32 0.0, %v2374
        %2376 = vmatmul.bf16.gmra.mxu0 %v2299
        %v2377 = vpop.f32.mrf.mxu0
        %v2378 = vadd.f32 0.0, %v2377
        %v2379 = vpop.f32.mrf.mxu0
        %v2380 = vadd.f32 0.0, %v2379
        %2381 = vmatmul.bf16.gmra.mxu0 %v2302
        %v2382 = vpop.f32.mrf.mxu0
        %v2383 = vadd.f32 0.0, %v2382
        %v2384 = vpop.f32.mrf.mxu0
        %v2385 = vadd.f32 0.0, %v2384
        %2386 = vmatmul.bf16.gmra.mxu0 %v2305
        %v2387 = vpop.f32.mrf.mxu0
        %v2388 = vadd.f32 0.0, %v2387
        %v2389 = vpop.f32.mrf.mxu0
        %v2390 = vadd.f32 0.0, %v2389
        %2391 = vmatmul.bf16.gmra.mxu0 %v2308
        %v2392 = vpop.f32.mrf.mxu0
        %v2393 = vadd.f32 0.0, %v2392
        %v2394 = vpop.f32.mrf.mxu0
        %v2395 = vadd.f32 0.0, %v2394
        %2396 = vmatmul.bf16.gmra.mxu0 %v2311
        %v2397 = vpop.f32.mrf.mxu0
        %v2398 = vadd.f32 0.0, %v2397
        %v2399 = vpop.f32.mrf.mxu0
        %v2400 = vadd.f32 0.0, %v2399
        %2401 = vdwg.mxu0
        %v2402 = vadd.f32 %v2024, %v2323
        %v2403 = vadd.f32 %v2026, %v2325
        %v2404 = vadd.f32 %v2029, %v2328
        %v2405 = vadd.f32 %v2031, %v2330
        %v2406 = vadd.f32 %v2034, %v2333
        %v2407 = vadd.f32 %v2036, %v2335
        %v2408 = vadd.f32 %v2039, %v2338
        %v2409 = vadd.f32 %v2041, %v2340
        %v2410 = vadd.f32 %v2044, %v2343
        %v2411 = vadd.f32 %v2046, %v2345
        %v2412 = vadd.f32 %v2049, %v2348
        %v2413 = vadd.f32 %v2051, %v2350
        %v2414 = vadd.f32 %v2054, %v2353
        %v2415 = vadd.f32 %v2056, %v2355
        %v2416 = vadd.f32 %v2059, %v2358
        %v2417 = vadd.f32 %v2061, %v2360
        %v2418 = vadd.f32 %v2064, %v2363
        %v2419 = vadd.f32 %v2066, %v2365
        %v2420 = vadd.f32 %v2069, %v2368
        %v2421 = vadd.f32 %v2071, %v2370
        %v2422 = vadd.f32 %v2074, %v2373
        %v2423 = vadd.f32 %v2076, %v2375
        %v2424 = vadd.f32 %v2079, %v2378
        %v2425 = vadd.f32 %v2081, %v2380
        %v2426 = vadd.f32 %v2084, %v2383
        %v2427 = vadd.f32 %v2086, %v2385
        %v2428 = vadd.f32 %v2089, %v2388
        %v2429 = vadd.f32 %v2091, %v2390
        %v2430 = vadd.f32 %v2094, %v2393
        %v2431 = vadd.f32 %v2096, %v2395
        %v2432 = vadd.f32 %v2099, %v2398
        %v2433 = vadd.f32 %v2101, %v2400
        %v2434 = vld [vmem:[%s4] sm:$0x1]
        %v2436 = vperm.slane %v2434, 0
        %v2438 = vadd.f32 %v2402, %v2436
        %v2439 = vadd.f32 %v2403, %v2436
        %v2440 = vadd.f32 %v2404, %v2436
        %v2441 = vadd.f32 %v2405, %v2436
        %v2442 = vadd.f32 %v2406, %v2436
        %v2443 = vadd.f32 %v2407, %v2436
        %v2444 = vadd.f32 %v2408, %v2436
        %v2445 = vadd.f32 %v2409, %v2436
        %v2446 = vadd.f32 %v2410, %v2436
        %v2447 = vadd.f32 %v2411, %v2436
        %v2448 = vadd.f32 %v2412, %v2436
        %v2449 = vadd.f32 %v2413, %v2436
        %v2450 = vadd.f32 %v2414, %v2436
        %v2451 = vadd.f32 %v2415, %v2436
        %v2452 = vadd.f32 %v2416, %v2436
        %v2453 = vadd.f32 %v2417, %v2436
        %v2454 = vadd.f32 %v2418, %v2436
        %v2455 = vadd.f32 %v2419, %v2436
        %v2456 = vadd.f32 %v2420, %v2436
        %v2457 = vadd.f32 %v2421, %v2436
        %v2458 = vadd.f32 %v2422, %v2436
        %v2459 = vadd.f32 %v2423, %v2436
        %v2460 = vadd.f32 %v2424, %v2436
        %v2461 = vadd.f32 %v2425, %v2436
        %v2462 = vadd.f32 %v2426, %v2436
        %v2463 = vadd.f32 %v2427, %v2436
        %v2464 = vadd.f32 %v2428, %v2436
        %v2465 = vadd.f32 %v2429, %v2436
        %v2466 = vadd.f32 %v2430, %v2436
        %v2467 = vadd.f32 %v2431, %v2436
        %v2468 = vadd.f32 %v2432, %v2436
        %v2469 = vadd.f32 %v2433, %v2436
        %v2470 = vmax.f32 %v2438, 0.0
        %v2471 = vmax.f32 %v2439, 0.0
        %v2472 = vmax.f32 %v2440, 0.0
        %v2473 = vmax.f32 %v2441, 0.0
        %v2474 = vmax.f32 %v2442, 0.0
        %v2475 = vmax.f32 %v2443, 0.0
        %v2476 = vmax.f32 %v2444, 0.0
        %v2477 = vmax.f32 %v2445, 0.0
        %v2478 = vmax.f32 %v2446, 0.0
        %v2479 = vmax.f32 %v2447, 0.0
        %v2480 = vmax.f32 %v2448, 0.0
        %v2481 = vmax.f32 %v2449, 0.0
        %v2482 = vmax.f32 %v2450, 0.0
        %v2483 = vmax.f32 %v2451, 0.0
        %v2484 = vmax.f32 %v2452, 0.0
        %v2485 = vmax.f32 %v2453, 0.0
        %v2486 = vmax.f32 %v2454, 0.0
        %v2487 = vmax.f32 %v2455, 0.0
        %v2488 = vmax.f32 %v2456, 0.0
        %v2489 = vmax.f32 %v2457, 0.0
        %v2490 = vmax.f32 %v2458, 0.0
        %v2491 = vmax.f32 %v2459, 0.0
        %v2492 = vmax.f32 %v2460, 0.0
        %v2493 = vmax.f32 %v2461, 0.0
        %v2494 = vmax.f32 %v2462, 0.0
        %v2495 = vmax.f32 %v2463, 0.0
        %v2496 = vmax.f32 %v2464, 0.0
        %v2497 = vmax.f32 %v2465, 0.0
        %v2498 = vmax.f32 %v2466, 0.0
        %v2499 = vmax.f32 %v2467, 0.0
        %v2500 = vmax.f32 %v2468, 0.0
        %v2501 = vmax.f32 %v2469, 0.0
        %v2502 = vpack.c.bf16 %v2471, %v2470
        %v2503 = vpack.c.bf16 %v2473, %v2472
        %v2504 = vpack.c.bf16 %v2475, %v2474
        %v2505 = vpack.c.bf16 %v2477, %v2476
        %v2506 = vpack.c.bf16 %v2479, %v2478
        %v2507 = vpack.c.bf16 %v2481, %v2480
        %v2508 = vpack.c.bf16 %v2483, %v2482
        %v2509 = vpack.c.bf16 %v2485, %v2484
        %v2510 = vpack.c.bf16 %v2487, %v2486
        %v2511 = vpack.c.bf16 %v2489, %v2488
        %v2512 = vpack.c.bf16 %v2491, %v2490
        %v2513 = vpack.c.bf16 %v2493, %v2492
        %v2514 = vpack.c.bf16 %v2495, %v2494
        %v2515 = vpack.c.bf16 %v2497, %v2496
        %v2516 = vpack.c.bf16 %v2499, %v2498
        %v2517 = vpack.c.bf16 %v2501, %v2500
        %v2518 = vld [vmem:[%s5] sm:$0xf]
        %v2519 = vld [vmem:[%s5 + $0x4] sm:$0xf]
        %v2520 = vld [vmem:[%s5 + $0x8] sm:$0xf]
        %v2521 = vld [vmem:[%s5 + $0xc] sm:$0xf]
        %v2522 = vld [vmem:[%s6] sm:$0x1]
        %v2524 = vperm.slane %v2522, 0
        %v2530 = vunpack.c.l.b16 %v2518
        %v2531 = vunpack.c.l.b16 %v2519
        %v2532 = vunpack.c.l.b16 %v2520
        %v2533 = vunpack.c.l.b16 %v2521
        %v2534 = vpack.c.b16 %v2531, %v2530
        %v2535 = vpack.c.b16 %v2533, %v2532
        %vm2538 = vcmask 261120
        %v2540 = vsel %vm2538, %v2502, 0
        %v2543 = vsel %vm2538, %v2503, 0
        %v2546 = vsel %vm2538, %v2504, 0
        %v2549 = vsel %vm2538, %v2505, 0
        %v2552 = vsel %vm2538, %v2506, 0
        %v2555 = vsel %vm2538, %v2507, 0
        %v2558 = vsel %vm2538, %v2508, 0
        %v2561 = vsel %vm2538, %v2509, 0
        %v2564 = vsel %vm2538, %v2510, 0
        %v2567 = vsel %vm2538, %v2511, 0
        %v2570 = vsel %vm2538, %v2512, 0
        %v2573 = vsel %vm2538, %v2513, 0
        %v2576 = vsel %vm2538, %v2514, 0
        %v2579 = vsel %vm2538, %v2515, 0
        %v2582 = vsel %vm2538, %v2516, 0
        %v2585 = vsel %vm2538, %v2517, 0
        %2587 = vmatpush.bf16.msra.mxu0 0
        %2588 = vmatpush.bf16.msra.mxu0 0
        %2589 = vmatpush.bf16.msra.mxu0 0
        %2590 = vmatpush.bf16.msra.mxu0 0
        %2591 = vmatpush.bf16.msra.mxu0 0
        %2592 = vmatpush.bf16.msra.mxu0 0
        %2593 = vmatpush.bf16.msra.mxu0 %v2535
        %2594 = vmatpush.bf16.msra.mxu0 %v2534
        %2595 = vmatmul.bf16.gmra.mxu0 %v2540
        %v2596 = vpop.f32.mrf.mxu0
        %v2597 = vadd.f32 %v2524, %v2596
        %v2598 = vpop.f32.mrf.mxu0
        %v2599 = vadd.f32 %v2524, %v2598
        %2600 = vmatmul.bf16.gmra.mxu0 %v2543
        %v2601 = vpop.f32.mrf.mxu0
        %v2602 = vadd.f32 %v2524, %v2601
        %v2603 = vpop.f32.mrf.mxu0
        %v2604 = vadd.f32 %v2524, %v2603
        %2605 = vmatmul.bf16.gmra.mxu0 %v2546
        %v2606 = vpop.f32.mrf.mxu0
        %v2607 = vadd.f32 %v2524, %v2606
        %v2608 = vpop.f32.mrf.mxu0
        %v2609 = vadd.f32 %v2524, %v2608
        %2610 = vmatmul.bf16.gmra.mxu0 %v2549
        %v2611 = vpop.f32.mrf.mxu0
        %v2612 = vadd.f32 %v2524, %v2611
        %v2613 = vpop.f32.mrf.mxu0
        %v2614 = vadd.f32 %v2524, %v2613
        %2615 = vmatmul.bf16.gmra.mxu0 %v2552
        %v2616 = vpop.f32.mrf.mxu0
        %v2617 = vadd.f32 %v2524, %v2616
        %v2618 = vpop.f32.mrf.mxu0
        %v2619 = vadd.f32 %v2524, %v2618
        %2620 = vmatmul.bf16.gmra.mxu0 %v2555
        %v2621 = vpop.f32.mrf.mxu0
        %v2622 = vadd.f32 %v2524, %v2621
        %v2623 = vpop.f32.mrf.mxu0
        %v2624 = vadd.f32 %v2524, %v2623
        %2625 = vmatmul.bf16.gmra.mxu0 %v2558
        %v2626 = vpop.f32.mrf.mxu0
        %v2627 = vadd.f32 %v2524, %v2626
        %v2628 = vpop.f32.mrf.mxu0
        %v2629 = vadd.f32 %v2524, %v2628
        %2630 = vmatmul.bf16.gmra.mxu0 %v2561
        %v2631 = vpop.f32.mrf.mxu0
        %v2632 = vadd.f32 %v2524, %v2631
        %v2633 = vpop.f32.mrf.mxu0
        %v2634 = vadd.f32 %v2524, %v2633
        %2635 = vmatmul.bf16.gmra.mxu0 %v2564
        %v2636 = vpop.f32.mrf.mxu0
        %v2637 = vadd.f32 %v2524, %v2636
        %v2638 = vpop.f32.mrf.mxu0
        %v2639 = vadd.f32 %v2524, %v2638
        %2640 = vmatmul.bf16.gmra.mxu0 %v2567
        %v2641 = vpop.f32.mrf.mxu0
        %v2642 = vadd.f32 %v2524, %v2641
        %v2643 = vpop.f32.mrf.mxu0
        %v2644 = vadd.f32 %v2524, %v2643
        %2645 = vmatmul.bf16.gmra.mxu0 %v2570
        %v2646 = vpop.f32.mrf.mxu0
        %v2647 = vadd.f32 %v2524, %v2646
        %v2648 = vpop.f32.mrf.mxu0
        %v2649 = vadd.f32 %v2524, %v2648
        %2650 = vmatmul.bf16.gmra.mxu0 %v2573
        %v2651 = vpop.f32.mrf.mxu0
        %v2652 = vadd.f32 %v2524, %v2651
        %v2653 = vpop.f32.mrf.mxu0
        %v2654 = vadd.f32 %v2524, %v2653
        %2655 = vmatmul.bf16.gmra.mxu0 %v2576
        %v2656 = vpop.f32.mrf.mxu0
        %v2657 = vadd.f32 %v2524, %v2656
        %v2658 = vpop.f32.mrf.mxu0
        %v2659 = vadd.f32 %v2524, %v2658
        %2660 = vmatmul.bf16.gmra.mxu0 %v2579
        %v2661 = vpop.f32.mrf.mxu0
        %v2662 = vadd.f32 %v2524, %v2661
        %v2663 = vpop.f32.mrf.mxu0
        %v2664 = vadd.f32 %v2524, %v2663
        %2665 = vmatmul.bf16.gmra.mxu0 %v2582
        %v2666 = vpop.f32.mrf.mxu0
        %v2667 = vadd.f32 %v2524, %v2666
        %v2668 = vpop.f32.mrf.mxu0
        %v2669 = vadd.f32 %v2524, %v2668
        %2670 = vmatmul.bf16.gmra.mxu0 %v2585
        %v2671 = vpop.f32.mrf.mxu0
        %v2672 = vadd.f32 %v2524, %v2671
        %v2673 = vpop.f32.mrf.mxu0
        %v2674 = vadd.f32 %v2524, %v2673
        %2675 = vdwg.mxu0
        %v2676 = vadd.f32 %v2597, %v409
        %v2677 = vadd.f32 %v2599, %v410
        %v2678 = vadd.f32 %v2602, %v411
        %v2679 = vadd.f32 %v2604, %v412
        %v2680 = vadd.f32 %v2607, %v413
        %v2681 = vadd.f32 %v2609, %v414
        %v2682 = vadd.f32 %v2612, %v415
        %v2683 = vadd.f32 %v2614, %v416
        %v2684 = vadd.f32 %v2617, %v417
        %v2685 = vadd.f32 %v2619, %v418
        %v2686 = vadd.f32 %v2622, %v419
        %v2687 = vadd.f32 %v2624, %v420
        %v2688 = vadd.f32 %v2627, %v421
        %v2689 = vadd.f32 %v2629, %v422
        %v2690 = vadd.f32 %v2632, %v423
        %v2691 = vadd.f32 %v2634, %v424
        %v2692 = vadd.f32 %v2637, %v425
        %v2693 = vadd.f32 %v2639, %v426
        %v2694 = vadd.f32 %v2642, %v427
        %v2695 = vadd.f32 %v2644, %v428
        %v2696 = vadd.f32 %v2647, %v429
        %v2697 = vadd.f32 %v2649, %v430
        %v2698 = vadd.f32 %v2652, %v431
        %v2699 = vadd.f32 %v2654, %v432
        %v2700 = vadd.f32 %v2657, %v433
        %v2701 = vadd.f32 %v2659, %v434
        %v2702 = vadd.f32 %v2662, %v435
        %v2703 = vadd.f32 %v2664, %v436
        %v2704 = vadd.f32 %v2667, %v437
        %v2705 = vadd.f32 %v2669, %v438
        %v2706 = vadd.f32 %v2672, %v439
        %v2707 = vadd.f32 %v2674, %v440
        %v2708 = vmax.f32 %v2676, 0.0
        %v2709 = vmax.f32 %v2677, 0.0
        %v2710 = vmax.f32 %v2678, 0.0
        %v2711 = vmax.f32 %v2679, 0.0
        %v2712 = vmax.f32 %v2680, 0.0
        %v2713 = vmax.f32 %v2681, 0.0
        %v2714 = vmax.f32 %v2682, 0.0
        %v2715 = vmax.f32 %v2683, 0.0
        %v2716 = vmax.f32 %v2684, 0.0
        %v2717 = vmax.f32 %v2685, 0.0
        %v2718 = vmax.f32 %v2686, 0.0
        %v2719 = vmax.f32 %v2687, 0.0
        %v2720 = vmax.f32 %v2688, 0.0
        %v2721 = vmax.f32 %v2689, 0.0
        %v2722 = vmax.f32 %v2690, 0.0
        %v2723 = vmax.f32 %v2691, 0.0
        %v2724 = vmax.f32 %v2692, 0.0
        %v2725 = vmax.f32 %v2693, 0.0
        %v2726 = vmax.f32 %v2694, 0.0
        %v2727 = vmax.f32 %v2695, 0.0
        %v2728 = vmax.f32 %v2696, 0.0
        %v2729 = vmax.f32 %v2697, 0.0
        %v2730 = vmax.f32 %v2698, 0.0
        %v2731 = vmax.f32 %v2699, 0.0
        %v2732 = vmax.f32 %v2700, 0.0
        %v2733 = vmax.f32 %v2701, 0.0
        %v2734 = vmax.f32 %v2702, 0.0
        %v2735 = vmax.f32 %v2703, 0.0
        %v2736 = vmax.f32 %v2704, 0.0
        %v2737 = vmax.f32 %v2705, 0.0
        %v2738 = vmax.f32 %v2706, 0.0
        %v2739 = vmax.f32 %v2707, 0.0
        %2740 = vst [vmem:[%s298] sm:$0xff] %v2708
        %2741 = vst [vmem:[%s298 + $0x8] sm:$0xff] %v2709
        %2742 = vst [vmem:[%s298 + $0x10] sm:$0xff] %v2710
        %2743 = vst [vmem:[%s298 + $0x18] sm:$0xff] %v2711
        %2744 = vst [vmem:[%s298 + $0x20] sm:$0xff] %v2712
        %2745 = vst [vmem:[%s298 + $0x28] sm:$0xff] %v2713
        %2746 = vst [vmem:[%s298 + $0x30] sm:$0xff] %v2714
        %2747 = vst [vmem:[%s298 + $0x38] sm:$0xff] %v2715
        %2748 = vst [vmem:[%s298 + $0x40] sm:$0xff] %v2716
        %2749 = vst [vmem:[%s298 + $0x48] sm:$0xff] %v2717
        %2750 = vst [vmem:[%s298 + $0x50] sm:$0xff] %v2718
        %2751 = vst [vmem:[%s298 + $0x58] sm:$0xff] %v2719
        %2752 = vst [vmem:[%s298 + $0x60] sm:$0xff] %v2720
        %2753 = vst [vmem:[%s298 + $0x68] sm:$0xff] %v2721
        %2754 = vst [vmem:[%s298 + $0x70] sm:$0xff] %v2722
        %2755 = vst [vmem:[%s298 + $0x78] sm:$0xff] %v2723
        %2756 = vst [vmem:[%s298 + $0x80] sm:$0xff] %v2724
        %2757 = vst [vmem:[%s298 + $0x88] sm:$0xff] %v2725
        %2758 = vst [vmem:[%s298 + $0x90] sm:$0xff] %v2726
        %2759 = vst [vmem:[%s298 + $0x98] sm:$0xff] %v2727
        %2760 = vst [vmem:[%s298 + $0xa0] sm:$0xff] %v2728
        %2761 = vst [vmem:[%s298 + $0xa8] sm:$0xff] %v2729
        %2762 = vst [vmem:[%s298 + $0xb0] sm:$0xff] %v2730
        %2763 = vst [vmem:[%s298 + $0xb8] sm:$0xff] %v2731
        %2764 = vst [vmem:[%s298 + $0xc0] sm:$0xff] %v2732
        %2765 = vst [vmem:[%s298 + $0xc8] sm:$0xff] %v2733
        %2766 = vst [vmem:[%s298 + $0xd0] sm:$0xff] %v2734
        %2767 = vst [vmem:[%s298 + $0xd8] sm:$0xff] %v2735
        %2768 = vst [vmem:[%s298 + $0xe0] sm:$0xff] %v2736
        %2769 = vst [vmem:[%s298 + $0xe8] sm:$0xff] %v2737
        %2770 = vst [vmem:[%s298 + $0xf0] sm:$0xff] %v2738
        %2771 = vst [vmem:[%s298 + $0xf8] sm:$0xff] %v2739
        %s2772 = sand.u32 %s184, 1
        %s2773 = scalar_lea.sflag [#allocation5], %s2772
        %s2774 = sand.u32 %s184, 1
        %s2775 = smul.addr %s2774, 256
        %s2776 = scalar_lea.vmem [#allocation6], %s2775
        // Predicated region
        $region53: #{tpu_custom_call.1} parent=47 // pred_check
          %p2777 = pneg %p194
        $region54: #{tpu_custom_call.1} parent=47 // pred_check_branch
          %2779 = sbr.rel (%p2777) target = $region56
        $region55: #{tpu_custom_call.1} parent=47 // pred_region
          %2781 = vsyncadd %s2773, 0
          %s2782 = smul.addr %s24, 32
          %s2783 = smul.addr %s2782, 8
          %s2784 = scalar_lea.hbm %s7, %s2783
          %s2785 = sshll.u32 %s2776, 4
          %s2786 = int_to_ptr.vmem [resolvable:$true] %s2785
          %s2787 = sshll.u32 %s2784, 4
          %s2788 = int_to_ptr.hbm [resolvable:$true] %s2787
          %2793 = dma.vmem_to_hbm [thread:$0]  %s2786, 4096, %s2788, %s2773, 128, 128, 8
        $region56: #{tpu_custom_call.1} parent=47 // pred_fallthru
          _
      $region48: #{tpu_custom_call.1} parent=5 // pred_fallthru
        _
      %p2794 = scmp.le.s32.totalorder 2, %s19
      // Predicated region
      $region57: #{tpu_custom_call.1} parent=5 // pred_check
        %p2795 = pneg %p2794
      $region58: #{tpu_custom_call.1} parent=5 // pred_check_branch
        %2797 = sbr.rel (%p2795) target = $region60
      $region59: #{tpu_custom_call.1} parent=5 // pred_region
        %s2798 = ssub.s32 %s19, 2
        // Predicated region
        $region61: #{tpu_custom_call.1} parent=59 // pred_check
          %p2799 = pneg %p200
        $region62: #{tpu_custom_call.1} parent=59 // pred_check_branch
          %2801 = sbr.rel (%p2799) target = $region64
        $region63: #{tpu_custom_call.1} parent=59 // pred_region
          %s2802 = sand.u32 %s185, 1
          %s2803 = scalar_lea.sflag [#allocation5], %s2802
          %s2804 = sand.u32 %s185, 1
          %s2805 = smul.addr %s2804, 256
          %s2806 = scalar_lea.vmem [#allocation6], %s2805
          %2808 = dma.done %s2803, 4096
        $region64: #{tpu_custom_call.1} parent=59 // pred_fallthru
          _
      $region60: #{tpu_custom_call.1} parent=5 // pred_fallthru
        _
    $region6: #{tpu_custom_call.1} parent=1 // loop_footer
      %s23 = sadd.s32 1, %s19
    $region7: #{tpu_custom_call.1} parent=1 // loop_footer_branch
      %18 = sbr.rel target = $region3
    $region8: #{tpu_custom_call.1} parent=1 // loop_exit
      _
    %2809 = vsyncpa [#allocation4], 1
    %s2810 = scalar_lea.sflag [#allocation4], 1
    %2811 = vsyncpa %s2810, 1
    %2812 = vsyncpa [#allocation5], 1
    %s2813 = scalar_lea.sflag [#allocation5], 1
    %2814 = vsyncpa %s2813, 1

</llo_original>
